<compile_context>
chip_gen: v5e
topology: v5e:2x2
jax: 0.10.0
libtpu: 0.0.40
codegen_flags: <defaults>
</compile_context>

<pallas_src>
import functools

import jax
import jax.numpy as jnp
from jax import lax
from jax.experimental import pallas as pl
from jax.experimental.pallas import tpu as pltpu


def laa_kernel(lq_ref, wloc_ref, lt_ref, im_ref, ws_ref, bias_ref, tgt_ref,
               out_ref, attn_ref):
    # lq_ref  : (Bblk, A, 1)   pre-projected query column per batch row
    # wloc_ref: (A, K)         fused location-conv filter (conv2_1x1 @ conv1), resident
    # lt_ref  : (Bblk, A, T)   processed memory, pre-transposed to (A, T)
    # im_ref  : (Bblk, K, T)   im2col patches of the padded previous attention
    # ws_ref  : (1, A)         lin_score weight, resident
    # bias_ref: (Bblk, 1, T)   additive mask bias (0 valid / -1e30 masked)
    # tgt_ref : (Bblk, T, E)   encoder memory
    # out_ref : (Bblk, 1, E)   attention context
    # attn_ref: (Bblk, 1, T)   attention weights
    Bblk, A, T = lt_ref.shape
    K = wloc_ref.shape[1]

    # ---- location features: one batched MXU matmul (A,K)@(K,T) per batch row.
    wloc_b = jnp.broadcast_to(wloc_ref[...].reshape(1, A, K), (Bblk, A, K))
    conv = jnp.einsum("bak,bkt->bat", wloc_b, im_ref[...],
                      preferred_element_type=jnp.float32)             # (Bblk, A, T)

    # ---- energies / score ------------------------------------------------
    x = jnp.tanh(lq_ref[...] + lt_ref[...] + conv)                    # (Bblk, A, T)
    ws_b = jnp.broadcast_to(ws_ref[...].reshape(1, 1, A), (Bblk, 1, A))
    score = jnp.einsum("boa,bat->bot", ws_b, x,
                       preferred_element_type=jnp.float32)            # (Bblk, 1, T)

    # ---- additive mask + softmax over T (the lane axis) -------------------
    score = score + bias_ref[...]
    m = jnp.max(score, axis=-1, keepdims=True)
    e = jnp.exp(score - m)
    attn = e / jnp.sum(e, axis=-1, keepdims=True)                     # (Bblk, 1, T)

    # ---- outputs: lane-dense attn rows + context via thin batched matmul --
    attn_ref[...] = attn
    out_ref[...] = jnp.einsum("bot,bte->boe", attn, tgt_ref[...],
                              preferred_element_type=jnp.float32)     # (Bblk, 1, E)


@functools.partial(jax.jit, static_argnames=("bblk",))
def location_aware_attention(query, target, l_target, prev_attention, mask,
                             w_q, w_conv1, w_conv2, w_s, *, bblk=8):
    """Forward pass of LocationAwareAttention.

    query          : (B, Dq) f32
    target         : (B, T, E) f32          (encoder memory)
    l_target       : (B, T, A) f32          (processed memory)
    prev_attention : (B, 1, T) f32
    mask           : (B, T, 1) bool         (True = masked)
    w_q            : (A, Dq)                torch Linear weight
    w_conv1        : (loc_dim, 1, K)        torch Conv1d weight (bias-free)
    w_conv2        : (A, loc_dim, 1)        torch Conv1d 1x1 weight (bias-free)
    w_s            : (1, A)                 torch Linear weight
    returns (out (B, E), attn (B, 1, T))
    """
    B, Dq = query.shape
    _, T, E = target.shape
    A = w_q.shape[0]
    K = w_conv1.shape[-1]
    assert K % 2 == 1, "loc_kernel must be odd to match PyTorch 'same' padding"
    pad = K // 2

    # ---- batch blocking: fill sublanes, keep grid >= 2 for v7x megacore ----
    bblk_eff = max(1, min(bblk, B))
    while bblk_eff > 1 and pl.cdiv(B, bblk_eff) < 2:
        bblk_eff //= 2
    Bp = pl.cdiv(B, bblk_eff) * bblk_eff

    # ---- fold the two bias-free location convs into one (A, K) filter (exact,
    #      only because both Conv1d layers are bias-free). -------------------
    w_loc = jnp.dot(w_conv2[:, :, 0], w_conv1[:, 0, :],
                    precision=lax.Precision.HIGHEST)                   # (A, K)

    # ---- hoisted query projection: one whole-batch GEMM ---------------------
    l_query = jnp.dot(query, w_q.T, precision=lax.Precision.HIGHEST)   # (B, A)
    lq3 = l_query[:, :, None]                                          # (B, A, 1)

    # ---- layout glue (cheap; l_target could be produced as (B,A,T) upstream) -
    lt_at = jnp.transpose(l_target, (0, 2, 1))                         # (B, A, T)

    # ---- wrapper-side im2col of the padded previous attention --------------
    pa_pad = jnp.pad(prev_attention[:, 0, :], ((0, 0), (pad, pad)))    # (B, T+K-1)
    im2col = jnp.stack([pa_pad[:, k:k + T] for k in range(K)], axis=1)  # (B, K, T)

    # ---- mask -> additive f32 bias ------------------------------------------
    # TODO(synk): a fully-masked row gives a uniform softmax here instead of
    # PyTorch's NaN (0/0); acceptable for valid inputs.
    bias = jnp.where(mask[:, :, 0], jnp.float32(-1e30),
                     jnp.float32(0.0))[:, None, :]                     # (B, 1, T)

    ws_row = w_s.reshape(1, A)

    # ---- pad batch up to a multiple of the block (rare path) ---------------
    if Bp != B:
        pn = Bp - B
        lq3 = jnp.pad(lq3, ((0, pn), (0, 0), (0, 0)))
        lt_at = jnp.pad(lt_at, ((0, pn), (0, 0), (0, 0)))
        im2col = jnp.pad(im2col, ((0, pn), (0, 0), (0, 0)))
        bias = jnp.pad(bias, ((0, pn), (0, 0), (0, 0)))
        target_p = jnp.pad(target, ((0, pn), (0, 0), (0, 0)))
    else:
        target_p = target

    out3, attn3 = pl.pallas_call(
        laa_kernel,
        grid=(Bp // bblk_eff,),
        in_specs=[
            pl.BlockSpec((bblk_eff, A, 1), lambda b: (b, 0, 0)),   # l_query
            pl.BlockSpec((A, K),           lambda b: (0, 0)),      # fused conv filter
            pl.BlockSpec((bblk_eff, A, T), lambda b: (b, 0, 0)),   # l_target (A, T)
            pl.BlockSpec((bblk_eff, K, T), lambda b: (b, 0, 0)),   # im2col patches
            pl.BlockSpec((1, A),           lambda b: (0, 0)),      # W_s
            pl.BlockSpec((bblk_eff, 1, T), lambda b: (b, 0, 0)),   # additive mask bias
            pl.BlockSpec((bblk_eff, T, E), lambda b: (b, 0, 0)),   # target
        ],
        out_specs=(
            pl.BlockSpec((bblk_eff, 1, E), lambda b: (b, 0, 0)),   # out
            pl.BlockSpec((bblk_eff, 1, T), lambda b: (b, 0, 0)),   # attn
        ),
        out_shape=(jax.ShapeDtypeStruct((Bp, 1, E), jnp.float32),
                   jax.ShapeDtypeStruct((Bp, 1, T), jnp.float32)),
        compiler_params=pltpu.CompilerParams(
            dimension_semantics=("parallel",),
            # At production shapes: raise to 64-96 MiB on v5e/v6e (128 MiB VMEM),
            # keep <=32 MiB and drop bblk to 4 on v7x (64 MiB VMEM).
            vmem_limit_bytes=32 * 1024 * 1024),
    )(lq3, w_loc, lt_at, im2col, ws_row, bias, target_p)

    return out3[:B, 0, :], attn3[:B]


def _reference(query, target, l_target, prev_attention, mask,
               w_q, w_conv1, w_conv2, w_s):
    """Pure-JAX reference mirroring the PyTorch module (f32-exact matmuls)."""
    hp = lax.Precision.HIGHEST
    K = w_conv1.shape[-1]
    pad = K // 2
    l_query = jnp.einsum("bd,ad->ba", query, w_q, precision=hp)[:, None, :]   # (B,1,A)
    c1 = lax.conv_general_dilated(prev_attention, w_conv1, (1,), [(pad, pad)],
                                  dimension_numbers=("NCH", "OIH", "NCH"),
                                  precision=hp)                               # (B,loc,T)
    c2 = lax.conv_general_dilated(c1, w_conv2, (1,), [(0, 0)],
                                  dimension_numbers=("NCH", "OIH", "NCH"),
                                  precision=hp)                               # (B,A,T)
    conv_loc = jnp.transpose(c2, (0, 2, 1))                                   # (B,T,A)
    energies = jnp.tanh(l_query + l_target + conv_loc)                        # (B,T,A)
    score = jnp.einsum("bta,oa->bto", energies, w_s, precision=hp)            # (B,T,1)
    score = jnp.where(mask, -jnp.inf, score)
    attn = jax.nn.softmax(score, axis=1)                                      # (B,T,1)
    attn = jnp.transpose(attn, (0, 2, 1))                                     # (B,1,T)
    align = jnp.einsum("but,bte->bue", attn, target, precision=hp)            # (B,1,E)
    return align[:, 0, :], attn


if __name__ == "__main__":
    # Small shapes consistent with LocationAwareAttention(dec_dim, attention_dim,
    # loc_kernel=31, loc_dim=32). B=16 so the batch-blocked grid has length 2
    # (both v7x TCs busy); T a multiple of 128 for lane density.
    B, Dq, A, loc_dim, K, T, E = 16, 16, 32, 32, 31, 128, 32

    key = jax.random.PRNGKey(0)
    ks = jax.random.split(key, 9)

    query = jax.random.normal(ks[0], (B, Dq), jnp.float32)
    target = jax.random.normal(ks[1], (B, T, E), jnp.float32)
    l_target = jax.random.normal(ks[2], (B, T, A), jnp.float32)
    prev_attention = jax.nn.softmax(
        jax.random.normal(ks[3], (B, T), jnp.float32), axis=-1)[:, None, :]   # (B,1,T)

    # Padding mask: positions beyond each sequence's valid length are masked.
    lens = jax.random.randint(ks[8], (B,), 40, T + 1)
    mask = (jnp.arange(T)[None, :] >= lens[:, None])[:, :, None]              # (B,T,1) bool

    # Parameters in torch layouts, deterministic uniform init.
    w_q = jax.random.uniform(ks[4], (A, Dq), jnp.float32,
                             -1.0 / Dq ** 0.5, 1.0 / Dq ** 0.5)
    w_s = jax.random.uniform(ks[5], (1, A), jnp.float32,
                             -1.0 / A ** 0.5, 1.0 / A ** 0.5)
    w_conv1 = jax.random.uniform(ks[6], (loc_dim, 1, K), jnp.float32,
                                 -1.0 / K ** 0.5, 1.0 / K ** 0.5)
    w_conv2 = jax.random.uniform(ks[7], (A, loc_dim, 1), jnp.float32,
                                 -1.0 / loc_dim ** 0.5, 1.0 / loc_dim ** 0.5)

    out, attn = location_aware_attention(query, target, l_target, prev_attention,
                                         mask, w_q, w_conv1, w_conv2, w_s)
    out = jax.block_until_ready(out)
    attn = jax.block_until_ready(attn)

    ref_out, ref_attn = _reference(query, target, l_target, prev_attention, mask,
                                   w_q, w_conv1, w_conv2, w_s)

    assert out.shape == (B, E) and attn.shape == (B, 1, T)
    assert jnp.allclose(attn, ref_attn, atol=1e-5, rtol=1e-4), "attn mismatch"
    assert jnp.allclose(out, ref_out, atol=1e-4, rtol=1e-4), "out mismatch"
    print("KERNEL_OK")
</pallas_src>

<mosaic_0001>
module attributes {stable_mosaic.version = 11 : i64} {
  func.func @laa_kernel(%arg0: i32, %arg1: memref<8x32x1xf32, #tpu.memory_space<vmem>>, %arg2: memref<32x31xf32, #tpu.memory_space<vmem>>, %arg3: memref<8x32x128xf32, #tpu.memory_space<vmem>>, %arg4: memref<8x31x128xf32, #tpu.memory_space<vmem>>, %arg5: memref<1x32xf32, #tpu.memory_space<vmem>>, %arg6: memref<8x1x128xf32, #tpu.memory_space<vmem>>, %arg7: memref<8x128x32xf32, #tpu.memory_space<vmem>>, %arg8: memref<8x1x32xf32, #tpu.memory_space<vmem>>, %arg9: memref<8x1x128xf32, #tpu.memory_space<vmem>>) attributes {dimension_semantics = [#tpu.dimension_semantics<parallel>], iteration_bounds = array<i64: 2>, scalar_prefetch = 0 : i64, scratch_operands = 0 : i64, tpu.core_type = #tpu.core_type<tc>, window_params = [{transform_indices = @transform_0, window_bounds = array<i64: 8, 32, 1>}, {pipeline_mode = #tpu.pipeline_mode<synchronous>, transform_indices = @transform_1, window_bounds = array<i64: 32, 31>}, {transform_indices = @transform_2, window_bounds = array<i64: 8, 32, 128>}, {transform_indices = @transform_3, window_bounds = array<i64: 8, 31, 128>}, {pipeline_mode = #tpu.pipeline_mode<synchronous>, transform_indices = @transform_4, window_bounds = array<i64: 1, 32>}, {transform_indices = @transform_5, window_bounds = array<i64: 8, 1, 128>}, {transform_indices = @transform_6, window_bounds = array<i64: 8, 128, 32>}, {transform_indices = @transform_7, window_bounds = array<i64: 8, 1, 32>}, {transform_indices = @transform_8, window_bounds = array<i64: 8, 1, 128>}]} {
    %c0 = arith.constant 0 : index
    %c0_0 = arith.constant 0 : index
    %0 = vector.load %arg2[%c0, %c0_0] : memref<32x31xf32, #tpu.memory_space<vmem>>, vector<32x31xf32>
    %1 = vector.shape_cast %0 : vector<32x31xf32> to vector<1x32x31xf32>
    %2 = vector.shape_cast %1 : vector<1x32x31xf32> to vector<1x32x31xf32>
    %3 = vector.broadcast %2 : vector<1x32x31xf32> to vector<8x32x31xf32>
    %c0_1 = arith.constant 0 : index
    %c0_2 = arith.constant 0 : index
    %c0_3 = arith.constant 0 : index
    %4 = vector.load %arg4[%c0_1, %c0_2, %c0_3] : memref<8x31x128xf32, #tpu.memory_space<vmem>>, vector<8x31x128xf32>
    "tpu.trace_start"() <{level = 10 : i32, message = "bak,bkt->bat"}> : () -> ()
    %cst = arith.constant dense<0.000000e+00> : vector<8x32x128xf32>
    %5 = tpu.matmul %3, %4, %cst {dimension_numbers = #tpu.dot_dimension_numbers<[2], [1], [1], [2], [0, 0, 0, 1, 1, 2], [0], [0]>} : vector<8x32x31xf32>, vector<8x31x128xf32>, vector<8x32x128xf32> -> vector<8x32x128xf32>
    "tpu.trace_stop"() : () -> ()
    %c0_4 = arith.constant 0 : index
    %c0_5 = arith.constant 0 : index
    %c0_6 = arith.constant 0 : index
    %6 = vector.load %arg1[%c0_4, %c0_5, %c0_6] : memref<8x32x1xf32, #tpu.memory_space<vmem>>, vector<8x32x1xf32>
    %c0_7 = arith.constant 0 : index
    %c0_8 = arith.constant 0 : index
    %c0_9 = arith.constant 0 : index
    %7 = vector.load %arg3[%c0_7, %c0_8, %c0_9] : memref<8x32x128xf32, #tpu.memory_space<vmem>>, vector<8x32x128xf32>
    %8 = vector.broadcast %6 : vector<8x32x1xf32> to vector<8x32x128xf32>
    %9 = arith.addf %8, %7 : vector<8x32x128xf32>
    %10 = arith.addf %9, %5 : vector<8x32x128xf32>
    %11 = math.tanh %10 : vector<8x32x128xf32>
    %c0_10 = arith.constant 0 : index
    %c0_11 = arith.constant 0 : index
    %12 = vector.load %arg5[%c0_10, %c0_11] : memref<1x32xf32, #tpu.memory_space<vmem>>, vector<1x32xf32>
    %13 = vector.shape_cast %12 : vector<1x32xf32> to vector<1x1x32xf32>
    %14 = vector.shape_cast %13 : vector<1x1x32xf32> to vector<1x1x32xf32>
    %15 = vector.broadcast %14 : vector<1x1x32xf32> to vector<8x1x32xf32>
    "tpu.trace_start"() <{level = 10 : i32, message = "boa,bat->bot"}> : () -> ()
    %cst_12 = arith.constant dense<0.000000e+00> : vector<8x1x128xf32>
    %16 = tpu.matmul %15, %11, %cst_12 {dimension_numbers = #tpu.dot_dimension_numbers<[2], [1], [1], [2], [0, 0, 0, 1, 1, 2], [0], [0]>} : vector<8x1x32xf32>, vector<8x32x128xf32>, vector<8x1x128xf32> -> vector<8x1x128xf32>
    "tpu.trace_stop"() : () -> ()
    %c0_13 = arith.constant 0 : index
    %c0_14 = arith.constant 0 : index
    %c0_15 = arith.constant 0 : index
    %17 = vector.load %arg6[%c0_13, %c0_14, %c0_15] : memref<8x1x128xf32, #tpu.memory_space<vmem>>, vector<8x1x128xf32>
    %18 = arith.addf %16, %17 : vector<8x1x128xf32>
    %cst_16 = arith.constant dense<0xFF800000> : vector<8x1xf32>
    %19 = vector.multi_reduction <maximumf>, %18, %cst_16 [2] : vector<8x1x128xf32> to vector<8x1xf32>
    %20 = vector.shape_cast %19 : vector<8x1xf32> to vector<8x1x1xf32>
    %21 = vector.broadcast %20 : vector<8x1x1xf32> to vector<8x1x128xf32>
    %22 = arith.subf %18, %21 : vector<8x1x128xf32>
    %23 = math.exp %22 : vector<8x1x128xf32>
    %cst_17 = arith.constant dense<0.000000e+00> : vector<8x1xf32>
    %24 = vector.multi_reduction <add>, %23, %cst_17 [2] : vector<8x1x128xf32> to vector<8x1xf32>
    %25 = vector.shape_cast %24 : vector<8x1xf32> to vector<8x1x1xf32>
    %26 = vector.broadcast %25 : vector<8x1x1xf32> to vector<8x1x128xf32>
    %27 = arith.divf %23, %26 : vector<8x1x128xf32>
    %c0_18 = arith.constant 0 : index
    %c0_19 = arith.constant 0 : index
    %c0_20 = arith.constant 0 : index
    %28 = vector.load %arg9[%c0_18, %c0_19, %c0_20] : memref<8x1x128xf32, #tpu.memory_space<vmem>>, vector<8x1x128xf32>
    tpu.vector_store %arg9[%c0_18, %c0_19, %c0_20], %27 {strides = array<i32>} : memref<8x1x128xf32, #tpu.memory_space<vmem>>, vector<8x1x128xf32>,
    %c0_21 = arith.constant 0 : index
    %c0_22 = arith.constant 0 : index
    %c0_23 = arith.constant 0 : index
    %29 = vector.load %arg7[%c0_21, %c0_22, %c0_23] : memref<8x128x32xf32, #tpu.memory_space<vmem>>, vector<8x128x32xf32>
    "tpu.trace_start"() <{level = 10 : i32, message = "bot,bte->boe"}> : () -> ()
    %cst_24 = arith.constant dense<0.000000e+00> : vector<8x1x32xf32>
    %30 = tpu.matmul %27, %29, %cst_24 {dimension_numbers = #tpu.dot_dimension_numbers<[2], [1], [1], [2], [0, 0, 0, 1, 1, 2], [0], [0]>} : vector<8x1x128xf32>, vector<8x128x32xf32>, vector<8x1x32xf32> -> vector<8x1x32xf32>
    "tpu.trace_stop"() : () -> ()
    %c0_25 = arith.constant 0 : index
    %c0_26 = arith.constant 0 : index
    %c0_27 = arith.constant 0 : index
    %31 = vector.load %arg8[%c0_25, %c0_26, %c0_27] : memref<8x1x32xf32, #tpu.memory_space<vmem>>, vector<8x1x32xf32>
    tpu.vector_store %arg8[%c0_25, %c0_26, %c0_27], %30 {strides = array<i32>} : memref<8x1x32xf32, #tpu.memory_space<vmem>>, vector<8x1x32xf32>,
    return
  }
  func.func @transform_0(%arg0: i32) -> (i32, i32, i32) {
    %c0_i32 = arith.constant 0 : i32
    %c0_i32_0 = arith.constant 0 : i32
    %c0_i32_1 = arith.constant 0 : i32
    return %arg0, %c0_i32, %c0_i32_0 : i32, i32, i32
  }
  func.func @transform_1(%arg0: i32) -> (i32, i32) {
    %c0_i32 = arith.constant 0 : i32
    %c0_i32_0 = arith.constant 0 : i32
    %c0_i32_1 = arith.constant 0 : i32
    return %c0_i32, %c0_i32_0 : i32, i32
  }
  func.func @transform_2(%arg0: i32) -> (i32, i32, i32) {
    %c0_i32 = arith.constant 0 : i32
    %c0_i32_0 = arith.constant 0 : i32
    %c0_i32_1 = arith.constant 0 : i32
    return %arg0, %c0_i32, %c0_i32_0 : i32, i32, i32
  }
  func.func @transform_3(%arg0: i32) -> (i32, i32, i32) {
    %c0_i32 = arith.constant 0 : i32
    %c0_i32_0 = arith.constant 0 : i32
    %c0_i32_1 = arith.constant 0 : i32
    return %arg0, %c0_i32, %c0_i32_0 : i32, i32, i32
  }
  func.func @transform_4(%arg0: i32) -> (i32, i32) {
    %c0_i32 = arith.constant 0 : i32
    %c0_i32_0 = arith.constant 0 : i32
    %c0_i32_1 = arith.constant 0 : i32
    return %c0_i32, %c0_i32_0 : i32, i32
  }
  func.func @transform_5(%arg0: i32) -> (i32, i32, i32) {
    %c0_i32 = arith.constant 0 : i32
    %c0_i32_0 = arith.constant 0 : i32
    %c0_i32_1 = arith.constant 0 : i32
    return %arg0, %c0_i32, %c0_i32_0 : i32, i32, i32
  }
  func.func @transform_6(%arg0: i32) -> (i32, i32, i32) {
    %c0_i32 = arith.constant 0 : i32
    %c0_i32_0 = arith.constant 0 : i32
    %c0_i32_1 = arith.constant 0 : i32
    return %arg0, %c0_i32, %c0_i32_0 : i32, i32, i32
  }
  func.func @transform_7(%arg0: i32) -> (i32, i32, i32) {
    %c0_i32 = arith.constant 0 : i32
    %c0_i32_0 = arith.constant 0 : i32
    %c0_i32_1 = arith.constant 0 : i32
    return %arg0, %c0_i32, %c0_i32_0 : i32, i32, i32
  }
  func.func @transform_8(%arg0: i32) -> (i32, i32, i32) {
    %c0_i32 = arith.constant 0 : i32
    %c0_i32_0 = arith.constant 0 : i32
    %c0_i32_1 = arith.constant 0 : i32
    return %arg0, %c0_i32, %c0_i32_0 : i32, i32, i32
  }
}

</mosaic_0001>

<llo_original>
// kernel: location_aware_attention.1
$region0: #{location_aware_attention.1}
  #allocation0 [shape = 'u32[]', space=smem, size = 0x4, offset = 0x4, fixed_abs, tag = 'smem constant byte address 0x4 - core index']
  #allocation1 [shape = 'u32[72,128]{1,0:T(1,128)}', space=vmem, size = 0x9000, scoped, tag = 'internal scratch']
  %s0 = inlined_call_operand.vmem [shape: f32[16,32,1], index: 0, kind: input, shape index: {}]
  %s1 = inlined_call_operand.vmem [shape: f32[32,31], index: 1, kind: input, shape index: {}]
  %s2 = inlined_call_operand.vmem [shape: f32[16,32,128], index: 2, kind: input, shape index: {}]
  %s3 = inlined_call_operand.vmem [shape: f32[16,31,128], index: 3, kind: input, shape index: {}]
  %s4 = inlined_call_operand.vmem [shape: f32[1,32], index: 4, kind: input, shape index: {}]
  %s5 = inlined_call_operand.vmem [shape: f32[16,1,128], index: 5, kind: input, shape index: {}]
  %s6 = inlined_call_operand.vmem [shape: f32[16,128,32], index: 6, kind: input, shape index: {}]
  %s7 = inlined_call_operand.hbm [shape: f32[16,1,32], index: 7, kind: output, shape index: {0}]
  %s8 = inlined_call_operand.hbm [shape: f32[16,1,128], index: 8, kind: output, shape index: {1}]
  %9 = xla_tuple %s7, %s8
  %s10 = sld [smem:[#allocation0]]
  $region69: #{location_aware_attention.1} parent=0
    _
  %s12 = ssub.s32 1, %s10
  %s13 = scalar_select 0, %s12, %s10
  $region1: #{location_aware_attention.1} parent=0
    #allocation2 [shape = 'u8[8192]{0}', space=vmem, size = 0x2000, scoped, tag = 'output window, operand 0']
    #allocation3 [shape = 's32[2]{0}', space=sflag, size = 0x8, scoped, tag = 'scoped memory for location_aware_attention.1']
    #allocation4 [shape = 'u8[8192]{0}', space=vmem, size = 0x2000, scoped, tag = 'output window, operand 1']
    #allocation5 [shape = 's32[2]{0}', space=sflag, size = 0x8, scoped, tag = 'scoped memory for location_aware_attention.1']
    %14 = vsyncpa [#allocation3], 0
    %s15 = scalar_lea.sflag [#allocation3], 1
    %16 = vsyncpa %s15, 0
    %17 = vsyncpa [#allocation5], 0
    %s18 = scalar_lea.sflag [#allocation5], 1
    %19 = vsyncpa %s18, 0
    loop: start=0, step=1, limit=4
    $region2: #{location_aware_attention.1} parent=1 // loop_pre_header
      _
    $region3: #{location_aware_attention.1} parent=1 // loop_header
      %s21 = sphi 0, %s25
      %p22 = scmp.ge.s32.totalorder %s21, 4
      %s31 = sphi 0, %s33
      %s34 = sphi 0, %s31
      %s35 = sphi 0, %s34
      %s51 = sphi 0, %s35
      %s55 = sphi 0, %s55
      %s57 = sphi 0, %s55
      %s58 = sphi 0, %s57
      %s72 = sphi 0, %s58
      %s78 = sphi 0, %s80
      %s81 = sphi 0, %s78
      %s82 = sphi 0, %s81
      %s98 = sphi 0, %s82
      %s104 = sphi 0, %s106
      %s107 = sphi 0, %s104
      %s108 = sphi 0, %s107
      %s124 = sphi 0, %s108
      %s128 = sphi 0, %s128
      %s130 = sphi 0, %s128
      %s131 = sphi 0, %s130
      %s145 = sphi 0, %s131
      %s151 = sphi 0, %s153
      %s154 = sphi 0, %s151
      %s155 = sphi 0, %s154
      %s171 = sphi 0, %s155
      %s177 = sphi 0, %s179
      %s180 = sphi 0, %s177
      %s181 = sphi 0, %s180
      %s197 = sphi 0, %s181
      %s203 = sphi 0, %s205
      %s206 = sphi 0, %s203
      %s207 = sphi 0, %s206
      %s223 = sphi 0, %s207
      %s229 = sphi 0, %s231
      %s232 = sphi 0, %s229
      %s233 = sphi 0, %s232
      %s249 = sphi 0, %s233
    $region4: #{location_aware_attention.1} parent=1 // loop_header_branch
      %24 = sbr.rel (%p22) target = $region8
    $region5: #{location_aware_attention.1} parent=1 // loop_body
      %s26 = ssub.s32 %s21, 1
      %s27 = ssub.s32 %s21, 2
      %s28 = sadd.s32 %s21, 1
      %s29 = ssub.s32 %s21, %s28
      %p30 = scmp.eq.s32.totalorder %s29, 0
      %s32 = sadd.s32 %s31, 1
      %s33 = scalar_select %p30, %s31, %s32
      %p36 = pneg %p30
      %p37 = scmp.eq.s32.totalorder %s21, 1
      %p38 = por %p36, %p37
      %p39 = scmp.ne.s32.totalorder %s31, %s34
      %p40 = scmp.eq.s32.totalorder %s21, 0
      %p41 = por %p39, %p40
      %p42 = scmp.ne.s32.totalorder %s31, %s34
      %p43 = scmp.eq.s32.totalorder %s26, 1
      %p44 = por %p42, %p43
      %p45 = scmp.ne.s32.totalorder %s34, %s35
      %p46 = scmp.eq.s32.totalorder %s26, 0
      %p47 = por %p45, %p46
      %p48 = scmp.ne.s32.totalorder %s34, %s35
      %p49 = scmp.eq.s32.totalorder %s27, 1
      %p50 = por %p48, %p49
      %p52 = scmp.ne.s32.totalorder %s35, %s51
      %p53 = scmp.eq.s32.totalorder %s27, 0
      %p54 = por %p52, %p53
      %s56 = sadd.s32 %s55, 1
      %p59 = scmp.eq.s32.totalorder %s21, 1
      %p60 = scmp.ne.s32.totalorder %s55, %s57
      %p61 = scmp.eq.s32.totalorder %s21, 0
      %p62 = por %p60, %p61
      %p63 = scmp.ne.s32.totalorder %s55, %s57
      %p64 = scmp.eq.s32.totalorder %s26, 1
      %p65 = por %p63, %p64
      %p66 = scmp.ne.s32.totalorder %s57, %s58
      %p67 = scmp.eq.s32.totalorder %s26, 0
      %p68 = por %p66, %p67
      %p69 = scmp.ne.s32.totalorder %s57, %s58
      %p70 = scmp.eq.s32.totalorder %s27, 1
      %p71 = por %p69, %p70
      %p73 = scmp.ne.s32.totalorder %s58, %s72
      %p74 = scmp.eq.s32.totalorder %s27, 0
      %p75 = por %p73, %p74
      %s76 = ssub.s32 %s21, %s28
      %p77 = scmp.eq.s32.totalorder %s76, 0
      %s79 = sadd.s32 %s78, 1
      %s80 = scalar_select %p77, %s78, %s79
      %p83 = pneg %p77
      %p84 = scmp.eq.s32.totalorder %s21, 1
      %p85 = por %p83, %p84
      %p86 = scmp.ne.s32.totalorder %s78, %s81
      %p87 = scmp.eq.s32.totalorder %s21, 0
      %p88 = por %p86, %p87
      %p89 = scmp.ne.s32.totalorder %s78, %s81
      %p90 = scmp.eq.s32.totalorder %s26, 1
      %p91 = por %p89, %p90
      %p92 = scmp.ne.s32.totalorder %s81, %s82
      %p93 = scmp.eq.s32.totalorder %s26, 0
      %p94 = por %p92, %p93
      %p95 = scmp.ne.s32.totalorder %s81, %s82
      %p96 = scmp.eq.s32.totalorder %s27, 1
      %p97 = por %p95, %p96
      %p99 = scmp.ne.s32.totalorder %s82, %s98
      %p100 = scmp.eq.s32.totalorder %s27, 0
      %p101 = por %p99, %p100
      %s102 = ssub.s32 %s21, %s28
      %p103 = scmp.eq.s32.totalorder %s102, 0
      %s105 = sadd.s32 %s104, 1
      %s106 = scalar_select %p103, %s104, %s105
      %p109 = pneg %p103
      %p110 = scmp.eq.s32.totalorder %s21, 1
      %p111 = por %p109, %p110
      %p112 = scmp.ne.s32.totalorder %s104, %s107
      %p113 = scmp.eq.s32.totalorder %s21, 0
      %p114 = por %p112, %p113
      %p115 = scmp.ne.s32.totalorder %s104, %s107
      %p116 = scmp.eq.s32.totalorder %s26, 1
      %p117 = por %p115, %p116
      %p118 = scmp.ne.s32.totalorder %s107, %s108
      %p119 = scmp.eq.s32.totalorder %s26, 0
      %p120 = por %p118, %p119
      %p121 = scmp.ne.s32.totalorder %s107, %s108
      %p122 = scmp.eq.s32.totalorder %s27, 1
      %p123 = por %p121, %p122
      %p125 = scmp.ne.s32.totalorder %s108, %s124
      %p126 = scmp.eq.s32.totalorder %s27, 0
      %p127 = por %p125, %p126
      %s129 = sadd.s32 %s128, 1
      %p132 = scmp.eq.s32.totalorder %s21, 1
      %p133 = scmp.ne.s32.totalorder %s128, %s130
      %p134 = scmp.eq.s32.totalorder %s21, 0
      %p135 = por %p133, %p134
      %p136 = scmp.ne.s32.totalorder %s128, %s130
      %p137 = scmp.eq.s32.totalorder %s26, 1
      %p138 = por %p136, %p137
      %p139 = scmp.ne.s32.totalorder %s130, %s131
      %p140 = scmp.eq.s32.totalorder %s26, 0
      %p141 = por %p139, %p140
      %p142 = scmp.ne.s32.totalorder %s130, %s131
      %p143 = scmp.eq.s32.totalorder %s27, 1
      %p144 = por %p142, %p143
      %p146 = scmp.ne.s32.totalorder %s131, %s145
      %p147 = scmp.eq.s32.totalorder %s27, 0
      %p148 = por %p146, %p147
      %s149 = ssub.s32 %s21, %s28
      %p150 = scmp.eq.s32.totalorder %s149, 0
      %s152 = sadd.s32 %s151, 1
      %s153 = scalar_select %p150, %s151, %s152
      %p156 = pneg %p150
      %p157 = scmp.eq.s32.totalorder %s21, 1
      %p158 = por %p156, %p157
      %p159 = scmp.ne.s32.totalorder %s151, %s154
      %p160 = scmp.eq.s32.totalorder %s21, 0
      %p161 = por %p159, %p160
      %p162 = scmp.ne.s32.totalorder %s151, %s154
      %p163 = scmp.eq.s32.totalorder %s26, 1
      %p164 = por %p162, %p163
      %p165 = scmp.ne.s32.totalorder %s154, %s155
      %p166 = scmp.eq.s32.totalorder %s26, 0
      %p167 = por %p165, %p166
      %p168 = scmp.ne.s32.totalorder %s154, %s155
      %p169 = scmp.eq.s32.totalorder %s27, 1
      %p170 = por %p168, %p169
      %p172 = scmp.ne.s32.totalorder %s155, %s171
      %p173 = scmp.eq.s32.totalorder %s27, 0
      %p174 = por %p172, %p173
      %s175 = ssub.s32 %s21, %s28
      %p176 = scmp.eq.s32.totalorder %s175, 0
      %s178 = sadd.s32 %s177, 1
      %s179 = scalar_select %p176, %s177, %s178
      %p182 = pneg %p176
      %p183 = scmp.eq.s32.totalorder %s21, 1
      %p184 = por %p182, %p183
      %p185 = scmp.ne.s32.totalorder %s177, %s180
      %p186 = scmp.eq.s32.totalorder %s21, 0
      %p187 = por %p185, %p186
      %p188 = scmp.ne.s32.totalorder %s177, %s180
      %p189 = scmp.eq.s32.totalorder %s26, 1
      %p190 = por %p188, %p189
      %p191 = scmp.ne.s32.totalorder %s180, %s181
      %p192 = scmp.eq.s32.totalorder %s26, 0
      %p193 = por %p191, %p192
      %p194 = scmp.ne.s32.totalorder %s180, %s181
      %p195 = scmp.eq.s32.totalorder %s27, 1
      %p196 = por %p194, %p195
      %p198 = scmp.ne.s32.totalorder %s181, %s197
      %p199 = scmp.eq.s32.totalorder %s27, 0
      %p200 = por %p198, %p199
      %s201 = ssub.s32 %s21, %s28
      %p202 = scmp.eq.s32.totalorder %s201, 0
      %s204 = sadd.s32 %s203, 1
      %s205 = scalar_select %p202, %s203, %s204
      %p208 = pneg %p202
      %p209 = scmp.eq.s32.totalorder %s21, 1
      %p210 = por %p208, %p209
      %p211 = scmp.ne.s32.totalorder %s203, %s206
      %p212 = scmp.eq.s32.totalorder %s21, 0
      %p213 = por %p211, %p212
      %p214 = scmp.ne.s32.totalorder %s203, %s206
      %p215 = scmp.eq.s32.totalorder %s26, 1
      %p216 = por %p214, %p215
      %p217 = scmp.ne.s32.totalorder %s206, %s207
      %p218 = scmp.eq.s32.totalorder %s26, 0
      %p219 = por %p217, %p218
      %p220 = scmp.ne.s32.totalorder %s206, %s207
      %p221 = scmp.eq.s32.totalorder %s27, 1
      %p222 = por %p220, %p221
      %p224 = scmp.ne.s32.totalorder %s207, %s223
      %p225 = scmp.eq.s32.totalorder %s27, 0
      %p226 = por %p224, %p225
      %s227 = ssub.s32 %s21, %s28
      %p228 = scmp.eq.s32.totalorder %s227, 0
      %s230 = sadd.s32 %s229, 1
      %s231 = scalar_select %p228, %s229, %s230
      %p234 = pneg %p228
      %p235 = scmp.eq.s32.totalorder %s21, 1
      %p236 = por %p234, %p235
      %p237 = scmp.ne.s32.totalorder %s229, %s232
      %p238 = scmp.eq.s32.totalorder %s21, 0
      %p239 = por %p237, %p238
      %p240 = scmp.ne.s32.totalorder %s229, %s232
      %p241 = scmp.eq.s32.totalorder %s26, 1
      %p242 = por %p240, %p241
      %p243 = scmp.ne.s32.totalorder %s232, %s233
      %p244 = scmp.eq.s32.totalorder %s26, 0
      %p245 = por %p243, %p244
      %p246 = scmp.ne.s32.totalorder %s232, %s233
      %p247 = scmp.eq.s32.totalorder %s27, 1
      %p248 = por %p246, %p247
      %p250 = scmp.ne.s32.totalorder %s233, %s249
      %p251 = scmp.eq.s32.totalorder %s27, 0
      %p252 = por %p250, %p251
      %p253 = scmp.le.s32.totalorder 1, %s21
      %p254 = scmp.lt.s32.totalorder %s21, 3
      %p255 = pnand %p253, %p254
      %p256 = pneg %p255
      // Predicated region
      $region9: #{location_aware_attention.1} parent=5 // pred_check
        _
      $region10: #{location_aware_attention.1} parent=5 // pred_check_branch
        %258 = sbr.rel (%p255) target = $region12
      $region11: #{location_aware_attention.1} parent=5 // pred_region
        %s259 = ssub.s32 %s21, 1
        // Predicated region
        $region13: #{location_aware_attention.1} parent=11 // pred_check
          %p260 = pneg %p68
        $region14: #{location_aware_attention.1} parent=11 // pred_check_branch
          %262 = sbr.rel (%p260) target = $region16
        $region15: #{location_aware_attention.1} parent=11 // pred_region
          _
        $region16: #{location_aware_attention.1} parent=11 // pred_fallthru
          _
        // Predicated region
        $region17: #{location_aware_attention.1} parent=11 // pred_check
          %p263 = pneg %p141
        $region18: #{location_aware_attention.1} parent=11 // pred_check_branch
          %265 = sbr.rel (%p263) target = $region20
        $region19: #{location_aware_attention.1} parent=11 // pred_region
          _
        $region20: #{location_aware_attention.1} parent=11 // pred_fallthru
          _
      $region12: #{location_aware_attention.1} parent=5 // pred_fallthru
        _
      %p266 = scmp.lt.s32.totalorder %s21, 2
      // Predicated region
      $region21: #{location_aware_attention.1} parent=5 // pred_check
        %p267 = pneg %p266
      $region22: #{location_aware_attention.1} parent=5 // pred_check_branch
        %269 = sbr.rel (%p267) target = $region24
      $region23: #{location_aware_attention.1} parent=5 // pred_region
        // Predicated region
        $region25: #{location_aware_attention.1} parent=23 // pred_check
          %p270 = pneg %p41
        $region26: #{location_aware_attention.1} parent=23 // pred_check_branch
          %272 = sbr.rel (%p270) target = $region28
        $region27: #{location_aware_attention.1} parent=23 // pred_region
          %s273 = smul.u32 8, %s21
          %p274 = scmp.lt.s32.totalorder %s273, 15
          %s275 = scalar_select %p274, %s273, 15
          %s276 = smul.addr %s275, 4
          %s277 = smul.addr %s276, 8
          %s278 = scalar_lea.vmem %s0, %s277
          %s279 = smul.u32 8, %s21
        $region28: #{location_aware_attention.1} parent=23 // pred_fallthru
          _
        // Predicated region
        $region29: #{location_aware_attention.1} parent=23 // pred_check
          %p280 = pneg %p88
        $region30: #{location_aware_attention.1} parent=23 // pred_check_branch
          %282 = sbr.rel (%p280) target = $region32
        $region31: #{location_aware_attention.1} parent=23 // pred_region
          %s283 = smul.u32 8, %s21
          %p284 = scmp.lt.s32.totalorder %s283, 15
          %s285 = scalar_select %p284, %s283, 15
          %s286 = smul.addr %s285, 4
          %s287 = smul.addr %s286, 8
          %s288 = scalar_lea.vmem %s2, %s287
          %s289 = smul.u32 8, %s21
        $region32: #{location_aware_attention.1} parent=23 // pred_fallthru
          _
        // Predicated region
        $region33: #{location_aware_attention.1} parent=23 // pred_check
          %p290 = pneg %p114
        $region34: #{location_aware_attention.1} parent=23 // pred_check_branch
          %292 = sbr.rel (%p290) target = $region36
        $region35: #{location_aware_attention.1} parent=23 // pred_region
          %s293 = smul.u32 8, %s21
          %p294 = scmp.lt.s32.totalorder %s293, 15
          %s295 = scalar_select %p294, %s293, 15
          %s296 = smul.addr %s295, 4
          %s297 = smul.addr %s296, 8
          %s298 = scalar_lea.vmem %s3, %s297
          %s299 = smul.u32 8, %s21
        $region36: #{location_aware_attention.1} parent=23 // pred_fallthru
          _
        // Predicated region
        $region37: #{location_aware_attention.1} parent=23 // pred_check
          %p300 = pneg %p161
        $region38: #{location_aware_attention.1} parent=23 // pred_check_branch
          %302 = sbr.rel (%p300) target = $region40
        $region39: #{location_aware_attention.1} parent=23 // pred_region
          %s303 = smul.u32 8, %s21
          %p304 = scmp.lt.s32.totalorder %s303, 15
          %s305 = scalar_select %p304, %s303, 15
          %s306 = scalar_lea.vmem %s5, %s305
          %s307 = smul.u32 8, %s21
        $region40: #{location_aware_attention.1} parent=23 // pred_fallthru
          _
        // Predicated region
        $region41: #{location_aware_attention.1} parent=23 // pred_check
          %p308 = pneg %p187
        $region42: #{location_aware_attention.1} parent=23 // pred_check_branch
          %310 = sbr.rel (%p308) target = $region44
        $region43: #{location_aware_attention.1} parent=23 // pred_region
          %s311 = smul.u32 8, %s21
          %p312 = scmp.lt.s32.totalorder %s311, 15
          %s313 = scalar_select %p312, %s311, 15
          %s314 = smul.addr %s313, 16
          %s315 = smul.addr %s314, 8
          %s316 = scalar_lea.vmem %s6, %s315
          %s317 = smul.u32 8, %s21
        $region44: #{location_aware_attention.1} parent=23 // pred_fallthru
          _
      $region24: #{location_aware_attention.1} parent=5 // pred_fallthru
        _
      %p318 = scmp.le.s32.totalorder 1, %s21
      %p319 = scmp.lt.s32.totalorder %s21, 3
      %p320 = pnand %p318, %p319
      %p321 = pneg %p320
      // Predicated region
      $region45: #{location_aware_attention.1} parent=5 // pred_check
        _
      $region46: #{location_aware_attention.1} parent=5 // pred_check_branch
        %323 = sbr.rel (%p320) target = $region48
      $region47: #{location_aware_attention.1} parent=5 // pred_region
        %s324 = ssub.s32 %s21, 1
        %s325 = smul.u32 8, %s26
        %p326 = scmp.lt.s32.totalorder %s325, 15
        %s327 = scalar_select %p326, %s325, 15
        %s328 = smul.addr %s327, 4
        %s329 = smul.addr %s328, 8
        %s330 = scalar_lea.vmem %s0, %s329
        %p331 = pneg %p47
        %p332 = pneg %p44
        %p333 = pneg %p68
        %p334 = pneg %p65
        %s335 = smul.u32 8, %s26
        %p336 = scmp.lt.s32.totalorder %s335, 15
        %s337 = scalar_select %p336, %s335, 15
        %s338 = smul.addr %s337, 4
        %s339 = smul.addr %s338, 8
        %s340 = scalar_lea.vmem %s2, %s339
        %p341 = pneg %p94
        %p342 = pneg %p91
        %s343 = smul.u32 8, %s26
        %p344 = scmp.lt.s32.totalorder %s343, 15
        %s345 = scalar_select %p344, %s343, 15
        %s346 = smul.addr %s345, 4
        %s347 = smul.addr %s346, 8
        %s348 = scalar_lea.vmem %s3, %s347
        %p349 = pneg %p120
        %p350 = pneg %p117
        %p351 = pneg %p141
        %p352 = pneg %p138
        %s353 = smul.u32 8, %s26
        %p354 = scmp.lt.s32.totalorder %s353, 15
        %s355 = scalar_select %p354, %s353, 15
        %s356 = scalar_lea.vmem %s5, %s355
        %p357 = pneg %p167
        %p358 = pneg %p164
        %s359 = smul.u32 8, %s26
        %p360 = scmp.lt.s32.totalorder %s359, 15
        %s361 = scalar_select %p360, %s359, 15
        %s362 = smul.addr %s361, 16
        %s363 = smul.addr %s362, 8
        %s364 = scalar_lea.vmem %s6, %s363
        %p365 = pneg %p193
        %p366 = pneg %p190
        %p367 = pneg %p219
        %p368 = pneg %p216
        %s369 = sand.u32 %s206, 1
        %s370 = scalar_lea.sflag [#allocation3], %s369
        %s371 = sand.u32 %s206, 1
        %s372 = smul.addr %s371, 8
        %s373 = scalar_lea.vmem [#allocation2], %s372
        %p374 = pneg %p245
        %p375 = pneg %p242
        %s376 = sand.u32 %s232, 1
        %s377 = scalar_lea.sflag [#allocation5], %s376
        %s378 = sand.u32 %s232, 1
        %s379 = smul.addr %s378, 8
        %s380 = scalar_lea.vmem [#allocation4], %s379
        %s381 = smul.u32 8, %s26
        %p382 = scmp.lt.s32.totalorder %s381, 15
        %s383 = scalar_select %p382, %s381, 15
        %s384 = smul.addr %s383, 4
        %s385 = smul.addr %s384, 8
        %s386 = scalar_lea.vmem %s0, %s385
        %s387 = smul.u32 8, %s26
        %s388 = smul.u32 8, %s26
        %p389 = scmp.lt.s32.totalorder %s388, 15
        %s390 = scalar_select %p389, %s388, 15
        %s391 = smul.addr %s390, 4
        %s392 = smul.addr %s391, 8
        %s393 = scalar_lea.vmem %s2, %s392
        %s394 = smul.u32 8, %s26
        %s395 = smul.u32 8, %s26
        %p396 = scmp.lt.s32.totalorder %s395, 15
        %s397 = scalar_select %p396, %s395, 15
        %s398 = smul.addr %s397, 4
        %s399 = smul.addr %s398, 8
        %s400 = scalar_lea.vmem %s3, %s399
        %s401 = smul.u32 8, %s26
        %s402 = smul.u32 8, %s26
        %p403 = scmp.lt.s32.totalorder %s402, 15
        %s404 = scalar_select %p403, %s402, 15
        %s405 = scalar_lea.vmem %s5, %s404
        %s406 = smul.u32 8, %s26
        %s407 = smul.u32 8, %s26
        %p408 = scmp.lt.s32.totalorder %s407, 15
        %s409 = scalar_select %p408, %s407, 15
        %s410 = smul.addr %s409, 16
        %s411 = smul.addr %s410, 8
        %s412 = scalar_lea.vmem %s6, %s411
        %s413 = smul.u32 8, %s26
        %s414 = smul.u32 8, %s26
        %s415 = smul.u32 8, %s26
        %v416 = vld [vmem:[%s1] sm:$0xff]
        %v417 = vld [vmem:[%s1 + $0x8] sm:$0xff]
        %v418 = vld [vmem:[%s1 + $0x10] sm:$0xff]
        %v419 = vld [vmem:[%s1 + $0x18] sm:$0xff]
        %v420 = vld [vmem:[%s400] sm:$0xff]
        %v421 = vld [vmem:[%s400 + $0x8] sm:$0xff]
        %v422 = vld [vmem:[%s400 + $0x10] sm:$0xff]
        %v423 = vld [vmem:[%s400 + $0x18] sm:$0x7f]
        %v424 = vld [vmem:[%s400 + $0x20] sm:$0xff]
        %v425 = vld [vmem:[%s400 + $0x28] sm:$0xff]
        %v426 = vld [vmem:[%s400 + $0x30] sm:$0xff]
        %v427 = vld [vmem:[%s400 + $0x38] sm:$0x7f]
        %v428 = vld [vmem:[%s400 + $0x40] sm:$0xff]
        %v429 = vld [vmem:[%s400 + $0x48] sm:$0xff]
        %v430 = vld [vmem:[%s400 + $0x50] sm:$0xff]
        %v431 = vld [vmem:[%s400 + $0x58] sm:$0x7f]
        %v432 = vld [vmem:[%s400 + $0x60] sm:$0xff]
        %v433 = vld [vmem:[%s400 + $0x68] sm:$0xff]
        %v434 = vld [vmem:[%s400 + $0x70] sm:$0xff]
        %v435 = vld [vmem:[%s400 + $0x78] sm:$0x7f]
        %v436 = vld [vmem:[%s400 + $0x80] sm:$0xff]
        %v437 = vld [vmem:[%s400 + $0x88] sm:$0xff]
        %v438 = vld [vmem:[%s400 + $0x90] sm:$0xff]
        %v439 = vld [vmem:[%s400 + $0x98] sm:$0x7f]
        %v440 = vld [vmem:[%s400 + $0xa0] sm:$0xff]
        %v441 = vld [vmem:[%s400 + $0xa8] sm:$0xff]
        %v442 = vld [vmem:[%s400 + $0xb0] sm:$0xff]
        %v443 = vld [vmem:[%s400 + $0xb8] sm:$0x7f]
        %v444 = vld [vmem:[%s400 + $0xc0] sm:$0xff]
        %v445 = vld [vmem:[%s400 + $0xc8] sm:$0xff]
        %v446 = vld [vmem:[%s400 + $0xd0] sm:$0xff]
        %v447 = vld [vmem:[%s400 + $0xd8] sm:$0x7f]
        %v448 = vld [vmem:[%s400 + $0xe0] sm:$0xff]
        %v449 = vld [vmem:[%s400 + $0xe8] sm:$0xff]
        %v450 = vld [vmem:[%s400 + $0xf0] sm:$0xff]
        %v451 = vld [vmem:[%s400 + $0xf8] sm:$0x7f]
        %vm452 = vcmask 252928
        %v454 = vsel %vm452, %v416, 0
        %v457 = vsel %vm452, %v417, 0
        %v460 = vsel %vm452, %v418, 0
        %v463 = vsel %vm452, %v419, 0
        %vm465 = vcmask 1046528
        %v467 = vsel %vm465, %v423, 0
        %469 = vmatpush.msra.mxu0 0.0
        %470 = vmatpush.msra.mxu0 0.0
        %471 = vmatpush.msra.mxu0 0.0
        %472 = vmatpush.msra.mxu0 0.0
        %473 = vmatpush.msra.mxu0 0.0
        %474 = vmatpush.msra.mxu0 0.0
        %475 = vmatpush.msra.mxu0 0.0
        %476 = vmatpush.msra.mxu0 0.0
        %477 = vmatpush.msra.mxu0 0.0
        %478 = vmatpush.msra.mxu0 0.0
        %479 = vmatpush.msra.mxu0 0.0
        %480 = vmatpush.msra.mxu0 0.0
        %481 = vmatpush.msra.mxu0 %v467
        %482 = vmatpush.msra.mxu0 %v422
        %483 = vmatpush.msra.mxu0 %v421
        %484 = vmatpush.msra.mxu0 %v420
        %485 = vmatmul.f32.gmra.mxu0 %v454
        %v486 = vpop.f32.mrf.mxu0
        %v487 = vadd.f32 0.0, %v486
        %488 = vmatmul.f32.gmra.mxu0 %v457
        %v489 = vpop.f32.mrf.mxu0
        %v490 = vadd.f32 0.0, %v489
        %491 = vmatmul.f32.gmra.mxu0 %v460
        %v492 = vpop.f32.mrf.mxu0
        %v493 = vadd.f32 0.0, %v492
        %494 = vmatmul.f32.gmra.mxu0 %v463
        %v495 = vpop.f32.mrf.mxu0
        %v496 = vadd.f32 0.0, %v495
        %497 = vdwg.mxu0
        %v499 = vsel %vm465, %v427, 0
        %501 = vmatpush.msra.mxu0 0.0
        %502 = vmatpush.msra.mxu0 0.0
        %503 = vmatpush.msra.mxu0 0.0
        %504 = vmatpush.msra.mxu0 0.0
        %505 = vmatpush.msra.mxu0 0.0
        %506 = vmatpush.msra.mxu0 0.0
        %507 = vmatpush.msra.mxu0 0.0
        %508 = vmatpush.msra.mxu0 0.0
        %509 = vmatpush.msra.mxu0 0.0
        %510 = vmatpush.msra.mxu0 0.0
        %511 = vmatpush.msra.mxu0 0.0
        %512 = vmatpush.msra.mxu0 0.0
        %513 = vmatpush.msra.mxu0 %v499
        %514 = vmatpush.msra.mxu0 %v426
        %515 = vmatpush.msra.mxu0 %v425
        %516 = vmatpush.msra.mxu0 %v424
        %517 = vmatmul.f32.gmra.mxu0 %v454
        %v518 = vpop.f32.mrf.mxu0
        %v519 = vadd.f32 0.0, %v518
        %520 = vmatmul.f32.gmra.mxu0 %v457
        %v521 = vpop.f32.mrf.mxu0
        %v522 = vadd.f32 0.0, %v521
        %523 = vmatmul.f32.gmra.mxu0 %v460
        %v524 = vpop.f32.mrf.mxu0
        %v525 = vadd.f32 0.0, %v524
        %526 = vmatmul.f32.gmra.mxu0 %v463
        %v527 = vpop.f32.mrf.mxu0
        %v528 = vadd.f32 0.0, %v527
        %529 = vdwg.mxu0
        %v531 = vsel %vm465, %v431, 0
        %533 = vmatpush.msra.mxu0 0.0
        %534 = vmatpush.msra.mxu0 0.0
        %535 = vmatpush.msra.mxu0 0.0
        %536 = vmatpush.msra.mxu0 0.0
        %537 = vmatpush.msra.mxu0 0.0
        %538 = vmatpush.msra.mxu0 0.0
        %539 = vmatpush.msra.mxu0 0.0
        %540 = vmatpush.msra.mxu0 0.0
        %541 = vmatpush.msra.mxu0 0.0
        %542 = vmatpush.msra.mxu0 0.0
        %543 = vmatpush.msra.mxu0 0.0
        %544 = vmatpush.msra.mxu0 0.0
        %545 = vmatpush.msra.mxu0 %v531
        %546 = vmatpush.msra.mxu0 %v430
        %547 = vmatpush.msra.mxu0 %v429
        %548 = vmatpush.msra.mxu0 %v428
        %549 = vmatmul.f32.gmra.mxu0 %v454
        %v550 = vpop.f32.mrf.mxu0
        %v551 = vadd.f32 0.0, %v550
        %552 = vmatmul.f32.gmra.mxu0 %v457
        %v553 = vpop.f32.mrf.mxu0
        %v554 = vadd.f32 0.0, %v553
        %555 = vmatmul.f32.gmra.mxu0 %v460
        %v556 = vpop.f32.mrf.mxu0
        %v557 = vadd.f32 0.0, %v556
        %558 = vmatmul.f32.gmra.mxu0 %v463
        %v559 = vpop.f32.mrf.mxu0
        %v560 = vadd.f32 0.0, %v559
        %561 = vdwg.mxu0
        %v563 = vsel %vm465, %v435, 0
        %565 = vmatpush.msra.mxu0 0.0
        %566 = vmatpush.msra.mxu0 0.0
        %567 = vmatpush.msra.mxu0 0.0
        %568 = vmatpush.msra.mxu0 0.0
        %569 = vmatpush.msra.mxu0 0.0
        %570 = vmatpush.msra.mxu0 0.0
        %571 = vmatpush.msra.mxu0 0.0
        %572 = vmatpush.msra.mxu0 0.0
        %573 = vmatpush.msra.mxu0 0.0
        %574 = vmatpush.msra.mxu0 0.0
        %575 = vmatpush.msra.mxu0 0.0
        %576 = vmatpush.msra.mxu0 0.0
        %577 = vmatpush.msra.mxu0 %v563
        %578 = vmatpush.msra.mxu0 %v434
        %579 = vmatpush.msra.mxu0 %v433
        %580 = vmatpush.msra.mxu0 %v432
        %581 = vmatmul.f32.gmra.mxu0 %v454
        %v582 = vpop.f32.mrf.mxu0
        %v583 = vadd.f32 0.0, %v582
        %584 = vmatmul.f32.gmra.mxu0 %v457
        %v585 = vpop.f32.mrf.mxu0
        %v586 = vadd.f32 0.0, %v585
        %587 = vmatmul.f32.gmra.mxu0 %v460
        %v588 = vpop.f32.mrf.mxu0
        %v589 = vadd.f32 0.0, %v588
        %590 = vmatmul.f32.gmra.mxu0 %v463
        %v591 = vpop.f32.mrf.mxu0
        %v592 = vadd.f32 0.0, %v591
        %593 = vdwg.mxu0
        %v595 = vsel %vm465, %v439, 0
        %597 = vmatpush.msra.mxu0 0.0
        %598 = vmatpush.msra.mxu0 0.0
        %599 = vmatpush.msra.mxu0 0.0
        %600 = vmatpush.msra.mxu0 0.0
        %601 = vmatpush.msra.mxu0 0.0
        %602 = vmatpush.msra.mxu0 0.0
        %603 = vmatpush.msra.mxu0 0.0
        %604 = vmatpush.msra.mxu0 0.0
        %605 = vmatpush.msra.mxu0 0.0
        %606 = vmatpush.msra.mxu0 0.0
        %607 = vmatpush.msra.mxu0 0.0
        %608 = vmatpush.msra.mxu0 0.0
        %609 = vmatpush.msra.mxu0 %v595
        %610 = vmatpush.msra.mxu0 %v438
        %611 = vmatpush.msra.mxu0 %v437
        %612 = vmatpush.msra.mxu0 %v436
        %613 = vmatmul.f32.gmra.mxu0 %v454
        %v614 = vpop.f32.mrf.mxu0
        %v615 = vadd.f32 0.0, %v614
        %616 = vmatmul.f32.gmra.mxu0 %v457
        %v617 = vpop.f32.mrf.mxu0
        %v618 = vadd.f32 0.0, %v617
        %619 = vmatmul.f32.gmra.mxu0 %v460
        %v620 = vpop.f32.mrf.mxu0
        %v621 = vadd.f32 0.0, %v620
        %622 = vmatmul.f32.gmra.mxu0 %v463
        %v623 = vpop.f32.mrf.mxu0
        %v624 = vadd.f32 0.0, %v623
        %625 = vdwg.mxu0
        %v627 = vsel %vm465, %v443, 0
        %629 = vmatpush.msra.mxu0 0.0
        %630 = vmatpush.msra.mxu0 0.0
        %631 = vmatpush.msra.mxu0 0.0
        %632 = vmatpush.msra.mxu0 0.0
        %633 = vmatpush.msra.mxu0 0.0
        %634 = vmatpush.msra.mxu0 0.0
        %635 = vmatpush.msra.mxu0 0.0
        %636 = vmatpush.msra.mxu0 0.0
        %637 = vmatpush.msra.mxu0 0.0
        %638 = vmatpush.msra.mxu0 0.0
        %639 = vmatpush.msra.mxu0 0.0
        %640 = vmatpush.msra.mxu0 0.0
        %641 = vmatpush.msra.mxu0 %v627
        %642 = vmatpush.msra.mxu0 %v442
        %643 = vmatpush.msra.mxu0 %v441
        %644 = vmatpush.msra.mxu0 %v440
        %645 = vmatmul.f32.gmra.mxu0 %v454
        %v646 = vpop.f32.mrf.mxu0
        %v647 = vadd.f32 0.0, %v646
        %648 = vmatmul.f32.gmra.mxu0 %v457
        %v649 = vpop.f32.mrf.mxu0
        %v650 = vadd.f32 0.0, %v649
        %651 = vmatmul.f32.gmra.mxu0 %v460
        %v652 = vpop.f32.mrf.mxu0
        %v653 = vadd.f32 0.0, %v652
        %654 = vmatmul.f32.gmra.mxu0 %v463
        %v655 = vpop.f32.mrf.mxu0
        %v656 = vadd.f32 0.0, %v655
        %657 = vdwg.mxu0
        %v659 = vsel %vm465, %v447, 0
        %661 = vmatpush.msra.mxu0 0.0
        %662 = vmatpush.msra.mxu0 0.0
        %663 = vmatpush.msra.mxu0 0.0
        %664 = vmatpush.msra.mxu0 0.0
        %665 = vmatpush.msra.mxu0 0.0
        %666 = vmatpush.msra.mxu0 0.0
        %667 = vmatpush.msra.mxu0 0.0
        %668 = vmatpush.msra.mxu0 0.0
        %669 = vmatpush.msra.mxu0 0.0
        %670 = vmatpush.msra.mxu0 0.0
        %671 = vmatpush.msra.mxu0 0.0
        %672 = vmatpush.msra.mxu0 0.0
        %673 = vmatpush.msra.mxu0 %v659
        %674 = vmatpush.msra.mxu0 %v446
        %675 = vmatpush.msra.mxu0 %v445
        %676 = vmatpush.msra.mxu0 %v444
        %677 = vmatmul.f32.gmra.mxu0 %v454
        %v678 = vpop.f32.mrf.mxu0
        %v679 = vadd.f32 0.0, %v678
        %680 = vmatmul.f32.gmra.mxu0 %v457
        %v681 = vpop.f32.mrf.mxu0
        %v682 = vadd.f32 0.0, %v681
        %683 = vmatmul.f32.gmra.mxu0 %v460
        %v684 = vpop.f32.mrf.mxu0
        %v685 = vadd.f32 0.0, %v684
        %686 = vmatmul.f32.gmra.mxu0 %v463
        %v687 = vpop.f32.mrf.mxu0
        %v688 = vadd.f32 0.0, %v687
        %689 = vdwg.mxu0
        %v691 = vsel %vm465, %v451, 0
        %693 = vmatpush.msra.mxu0 0.0
        %694 = vmatpush.msra.mxu0 0.0
        %695 = vmatpush.msra.mxu0 0.0
        %696 = vmatpush.msra.mxu0 0.0
        %697 = vmatpush.msra.mxu0 0.0
        %698 = vmatpush.msra.mxu0 0.0
        %699 = vmatpush.msra.mxu0 0.0
        %700 = vmatpush.msra.mxu0 0.0
        %701 = vmatpush.msra.mxu0 0.0
        %702 = vmatpush.msra.mxu0 0.0
        %703 = vmatpush.msra.mxu0 0.0
        %704 = vmatpush.msra.mxu0 0.0
        %705 = vmatpush.msra.mxu0 %v691
        %706 = vmatpush.msra.mxu0 %v450
        %707 = vmatpush.msra.mxu0 %v449
        %708 = vmatpush.msra.mxu0 %v448
        %709 = vmatmul.f32.gmra.mxu0 %v454
        %v710 = vpop.f32.mrf.mxu0
        %v711 = vadd.f32 0.0, %v710
        %712 = vmatmul.f32.gmra.mxu0 %v457
        %v713 = vpop.f32.mrf.mxu0
        %v714 = vadd.f32 0.0, %v713
        %715 = vmatmul.f32.gmra.mxu0 %v460
        %v716 = vpop.f32.mrf.mxu0
        %v717 = vadd.f32 0.0, %v716
        %718 = vmatmul.f32.gmra.mxu0 %v463
        %v719 = vpop.f32.mrf.mxu0
        %v720 = vadd.f32 0.0, %v719
        %721 = vdwg.mxu0
        %v722 = vld [vmem:[%s386] sm:$0xff]
        %v723 = vld [vmem:[%s386 + $0x8] sm:$0xff]
        %v724 = vld [vmem:[%s386 + $0x10] sm:$0xff]
        %v725 = vld [vmem:[%s386 + $0x18] sm:$0xff]
        %v726 = vld [vmem:[%s386 + $0x20] sm:$0xff]
        %v727 = vld [vmem:[%s386 + $0x28] sm:$0xff]
        %v728 = vld [vmem:[%s386 + $0x30] sm:$0xff]
        %v729 = vld [vmem:[%s386 + $0x38] sm:$0xff]
        %v730 = vld [vmem:[%s386 + $0x40] sm:$0xff]
        %v731 = vld [vmem:[%s386 + $0x48] sm:$0xff]
        %v732 = vld [vmem:[%s386 + $0x50] sm:$0xff]
        %v733 = vld [vmem:[%s386 + $0x58] sm:$0xff]
        %v734 = vld [vmem:[%s386 + $0x60] sm:$0xff]
        %v735 = vld [vmem:[%s386 + $0x68] sm:$0xff]
        %v736 = vld [vmem:[%s386 + $0x70] sm:$0xff]
        %v737 = vld [vmem:[%s386 + $0x78] sm:$0xff]
        %v738 = vld [vmem:[%s386 + $0x80] sm:$0xff]
        %v739 = vld [vmem:[%s386 + $0x88] sm:$0xff]
        %v740 = vld [vmem:[%s386 + $0x90] sm:$0xff]
        %v741 = vld [vmem:[%s386 + $0x98] sm:$0xff]
        %v742 = vld [vmem:[%s386 + $0xa0] sm:$0xff]
        %v743 = vld [vmem:[%s386 + $0xa8] sm:$0xff]
        %v744 = vld [vmem:[%s386 + $0xb0] sm:$0xff]
        %v745 = vld [vmem:[%s386 + $0xb8] sm:$0xff]
        %v746 = vld [vmem:[%s386 + $0xc0] sm:$0xff]
        %v747 = vld [vmem:[%s386 + $0xc8] sm:$0xff]
        %v748 = vld [vmem:[%s386 + $0xd0] sm:$0xff]
        %v749 = vld [vmem:[%s386 + $0xd8] sm:$0xff]
        %v750 = vld [vmem:[%s386 + $0xe0] sm:$0xff]
        %v751 = vld [vmem:[%s386 + $0xe8] sm:$0xff]
        %v752 = vld [vmem:[%s386 + $0xf0] sm:$0xff]
        %v753 = vld [vmem:[%s386 + $0xf8] sm:$0xff]
        %v754 = vld [vmem:[%s393] sm:$0xff]
        %v755 = vld [vmem:[%s393 + $0x8] sm:$0xff]
        %v756 = vld [vmem:[%s393 + $0x10] sm:$0xff]
        %v757 = vld [vmem:[%s393 + $0x18] sm:$0xff]
        %v758 = vld [vmem:[%s393 + $0x20] sm:$0xff]
        %v759 = vld [vmem:[%s393 + $0x28] sm:$0xff]
        %v760 = vld [vmem:[%s393 + $0x30] sm:$0xff]
        %v761 = vld [vmem:[%s393 + $0x38] sm:$0xff]
        %v762 = vld [vmem:[%s393 + $0x40] sm:$0xff]
        %v763 = vld [vmem:[%s393 + $0x48] sm:$0xff]
        %v764 = vld [vmem:[%s393 + $0x50] sm:$0xff]
        %v765 = vld [vmem:[%s393 + $0x58] sm:$0xff]
        %v766 = vld [vmem:[%s393 + $0x60] sm:$0xff]
        %v767 = vld [vmem:[%s393 + $0x68] sm:$0xff]
        %v768 = vld [vmem:[%s393 + $0x70] sm:$0xff]
        %v769 = vld [vmem:[%s393 + $0x78] sm:$0xff]
        %v770 = vld [vmem:[%s393 + $0x80] sm:$0xff]
        %v771 = vld [vmem:[%s393 + $0x88] sm:$0xff]
        %v772 = vld [vmem:[%s393 + $0x90] sm:$0xff]
        %v773 = vld [vmem:[%s393 + $0x98] sm:$0xff]
        %v774 = vld [vmem:[%s393 + $0xa0] sm:$0xff]
        %v775 = vld [vmem:[%s393 + $0xa8] sm:$0xff]
        %v776 = vld [vmem:[%s393 + $0xb0] sm:$0xff]
        %v777 = vld [vmem:[%s393 + $0xb8] sm:$0xff]
        %v778 = vld [vmem:[%s393 + $0xc0] sm:$0xff]
        %v779 = vld [vmem:[%s393 + $0xc8] sm:$0xff]
        %v780 = vld [vmem:[%s393 + $0xd0] sm:$0xff]
        %v781 = vld [vmem:[%s393 + $0xd8] sm:$0xff]
        %v782 = vld [vmem:[%s393 + $0xe0] sm:$0xff]
        %v783 = vld [vmem:[%s393 + $0xe8] sm:$0xff]
        %v784 = vld [vmem:[%s393 + $0xf0] sm:$0xff]
        %v785 = vld [vmem:[%s393 + $0xf8] sm:$0xff]
        %787 = vset.pattern.permute.xlu0 0
        %788 = vperm.xlu0 %787, %v722
        %v789 = vpop.permute.xlu0 %788
        %792 = vset.pattern.permute.xlu0 0
        %793 = vperm.xlu0 %792, %v723
        %v794 = vpop.permute.xlu0 %793
        %797 = vset.pattern.permute.xlu0 0
        %798 = vperm.xlu0 %797, %v724
        %v799 = vpop.permute.xlu0 %798
        %802 = vset.pattern.permute.xlu0 0
        %803 = vperm.xlu0 %802, %v725
        %v804 = vpop.permute.xlu0 %803
        %807 = vset.pattern.permute.xlu0 0
        %808 = vperm.xlu0 %807, %v726
        %v809 = vpop.permute.xlu0 %808
        %812 = vset.pattern.permute.xlu0 0
        %813 = vperm.xlu0 %812, %v727
        %v814 = vpop.permute.xlu0 %813
        %817 = vset.pattern.permute.xlu0 0
        %818 = vperm.xlu0 %817, %v728
        %v819 = vpop.permute.xlu0 %818
        %822 = vset.pattern.permute.xlu0 0
        %823 = vperm.xlu0 %822, %v729
        %v824 = vpop.permute.xlu0 %823
        %827 = vset.pattern.permute.xlu0 0
        %828 = vperm.xlu0 %827, %v730
        %v829 = vpop.permute.xlu0 %828
        %832 = vset.pattern.permute.xlu0 0
        %833 = vperm.xlu0 %832, %v731
        %v834 = vpop.permute.xlu0 %833
        %837 = vset.pattern.permute.xlu0 0
        %838 = vperm.xlu0 %837, %v732
        %v839 = vpop.permute.xlu0 %838
        %842 = vset.pattern.permute.xlu0 0
        %843 = vperm.xlu0 %842, %v733
        %v844 = vpop.permute.xlu0 %843
        %847 = vset.pattern.permute.xlu0 0
        %848 = vperm.xlu0 %847, %v734
        %v849 = vpop.permute.xlu0 %848
        %852 = vset.pattern.permute.xlu0 0
        %853 = vperm.xlu0 %852, %v735
        %v854 = vpop.permute.xlu0 %853
        %857 = vset.pattern.permute.xlu0 0
        %858 = vperm.xlu0 %857, %v736
        %v859 = vpop.permute.xlu0 %858
        %862 = vset.pattern.permute.xlu0 0
        %863 = vperm.xlu0 %862, %v737
        %v864 = vpop.permute.xlu0 %863
        %867 = vset.pattern.permute.xlu0 0
        %868 = vperm.xlu0 %867, %v738
        %v869 = vpop.permute.xlu0 %868
        %872 = vset.pattern.permute.xlu0 0
        %873 = vperm.xlu0 %872, %v739
        %v874 = vpop.permute.xlu0 %873
        %877 = vset.pattern.permute.xlu0 0
        %878 = vperm.xlu0 %877, %v740
        %v879 = vpop.permute.xlu0 %878
        %882 = vset.pattern.permute.xlu0 0
        %883 = vperm.xlu0 %882, %v741
        %v884 = vpop.permute.xlu0 %883
        %887 = vset.pattern.permute.xlu0 0
        %888 = vperm.xlu0 %887, %v742
        %v889 = vpop.permute.xlu0 %888
        %892 = vset.pattern.permute.xlu0 0
        %893 = vperm.xlu0 %892, %v743
        %v894 = vpop.permute.xlu0 %893
        %897 = vset.pattern.permute.xlu0 0
        %898 = vperm.xlu0 %897, %v744
        %v899 = vpop.permute.xlu0 %898
        %902 = vset.pattern.permute.xlu0 0
        %903 = vperm.xlu0 %902, %v745
        %v904 = vpop.permute.xlu0 %903
        %907 = vset.pattern.permute.xlu0 0
        %908 = vperm.xlu0 %907, %v746
        %v909 = vpop.permute.xlu0 %908
        %912 = vset.pattern.permute.xlu0 0
        %913 = vperm.xlu0 %912, %v747
        %v914 = vpop.permute.xlu0 %913
        %917 = vset.pattern.permute.xlu0 0
        %918 = vperm.xlu0 %917, %v748
        %v919 = vpop.permute.xlu0 %918
        %922 = vset.pattern.permute.xlu0 0
        %923 = vperm.xlu0 %922, %v749
        %v924 = vpop.permute.xlu0 %923
        %927 = vset.pattern.permute.xlu0 0
        %928 = vperm.xlu0 %927, %v750
        %v929 = vpop.permute.xlu0 %928
        %932 = vset.pattern.permute.xlu0 0
        %933 = vperm.xlu0 %932, %v751
        %v934 = vpop.permute.xlu0 %933
        %937 = vset.pattern.permute.xlu0 0
        %938 = vperm.xlu0 %937, %v752
        %v939 = vpop.permute.xlu0 %938
        %942 = vset.pattern.permute.xlu0 0
        %943 = vperm.xlu0 %942, %v753
        %v944 = vpop.permute.xlu0 %943
        %v946 = vadd.f32 %v789, %v754
        %v947 = vadd.f32 %v794, %v755
        %v948 = vadd.f32 %v799, %v756
        %v949 = vadd.f32 %v804, %v757
        %v950 = vadd.f32 %v809, %v758
        %v951 = vadd.f32 %v814, %v759
        %v952 = vadd.f32 %v819, %v760
        %v953 = vadd.f32 %v824, %v761
        %v954 = vadd.f32 %v829, %v762
        %v955 = vadd.f32 %v834, %v763
        %v956 = vadd.f32 %v839, %v764
        %v957 = vadd.f32 %v844, %v765
        %v958 = vadd.f32 %v849, %v766
        %v959 = vadd.f32 %v854, %v767
        %v960 = vadd.f32 %v859, %v768
        %v961 = vadd.f32 %v864, %v769
        %v962 = vadd.f32 %v869, %v770
        %v963 = vadd.f32 %v874, %v771
        %v964 = vadd.f32 %v879, %v772
        %v965 = vadd.f32 %v884, %v773
        %v966 = vadd.f32 %v889, %v774
        %v967 = vadd.f32 %v894, %v775
        %v968 = vadd.f32 %v899, %v776
        %v969 = vadd.f32 %v904, %v777
        %v970 = vadd.f32 %v909, %v778
        %v971 = vadd.f32 %v914, %v779
        %v972 = vadd.f32 %v919, %v780
        %v973 = vadd.f32 %v924, %v781
        %v974 = vadd.f32 %v929, %v782
        %v975 = vadd.f32 %v934, %v783
        %v976 = vadd.f32 %v939, %v784
        %v977 = vadd.f32 %v944, %v785
        %v978 = vadd.f32 %v946, %v487
        %v979 = vadd.f32 %v947, %v490
        %v980 = vadd.f32 %v948, %v493
        %v981 = vadd.f32 %v949, %v496
        %v982 = vadd.f32 %v950, %v519
        %v983 = vadd.f32 %v951, %v522
        %v984 = vadd.f32 %v952, %v525
        %v985 = vadd.f32 %v953, %v528
        %v986 = vadd.f32 %v954, %v551
        %v987 = vadd.f32 %v955, %v554
        %v988 = vadd.f32 %v956, %v557
        %v989 = vadd.f32 %v957, %v560
        %v990 = vadd.f32 %v958, %v583
        %v991 = vadd.f32 %v959, %v586
        %v992 = vadd.f32 %v960, %v589
        %v993 = vadd.f32 %v961, %v592
        %v994 = vadd.f32 %v962, %v615
        %v995 = vadd.f32 %v963, %v618
        %v996 = vadd.f32 %v964, %v621
        %v997 = vadd.f32 %v965, %v624
        %v998 = vadd.f32 %v966, %v647
        %v999 = vadd.f32 %v967, %v650
        %v1000 = vadd.f32 %v968, %v653
        %v1001 = vadd.f32 %v969, %v656
        %v1002 = vadd.f32 %v970, %v679
        %v1003 = vadd.f32 %v971, %v682
        %v1004 = vadd.f32 %v972, %v685
        %v1005 = vadd.f32 %v973, %v688
        %v1006 = vadd.f32 %v974, %v711
        %v1007 = vadd.f32 %v975, %v714
        %v1008 = vadd.f32 %v976, %v717
        %v1009 = vadd.f32 %v977, %v720
        %v1010 = vtanh.pop %v978
        %v1011 = vtanh.pop %v979
        %v1012 = vtanh.pop %v980
        %v1013 = vtanh.pop %v981
        %v1014 = vtanh.pop %v982
        %v1015 = vtanh.pop %v983
        %v1016 = vtanh.pop %v984
        %v1017 = vtanh.pop %v985
        %v1018 = vtanh.pop %v986
        %v1019 = vtanh.pop %v987
        %v1020 = vtanh.pop %v988
        %v1021 = vtanh.pop %v989
        %v1022 = vtanh.pop %v990
        %v1023 = vtanh.pop %v991
        %v1024 = vtanh.pop %v992
        %v1025 = vtanh.pop %v993
        %v1026 = vtanh.pop %v994
        %v1027 = vtanh.pop %v995
        %v1028 = vtanh.pop %v996
        %v1029 = vtanh.pop %v997
        %v1030 = vtanh.pop %v998
        %v1031 = vtanh.pop %v999
        %v1032 = vtanh.pop %v1000
        %v1033 = vtanh.pop %v1001
        %v1034 = vtanh.pop %v1002
        %v1035 = vtanh.pop %v1003
        %v1036 = vtanh.pop %v1004
        %v1037 = vtanh.pop %v1005
        %v1038 = vtanh.pop %v1006
        %v1039 = vtanh.pop %v1007
        %v1040 = vtanh.pop %v1008
        %v1041 = vtanh.pop %v1009
        %v1042 = vld [vmem:[%s4] sm:$0x1]
        %v1043 = vld [vmem:[%s405] sm:$0x1]
        %v1044 = vld [vmem:[%s405 + $0x1] sm:$0x1]
        %v1045 = vld [vmem:[%s405 + $0x2] sm:$0x1]
        %v1046 = vld [vmem:[%s405 + $0x3] sm:$0x1]
        %v1047 = vld [vmem:[%s405 + $0x4] sm:$0x1]
        %v1048 = vld [vmem:[%s405 + $0x5] sm:$0x1]
        %v1049 = vld [vmem:[%s405 + $0x6] sm:$0x1]
        %v1050 = vld [vmem:[%s405 + $0x7] sm:$0x1]
        %vm1051 = vcmask 261120
        %v1053 = vsel %vm1051, %v1042, 0
        %1055 = vmatpush.msra.mxu0 0.0
        %1056 = vmatpush.msra.mxu0 0.0
        %1057 = vmatpush.msra.mxu0 0.0
        %1058 = vmatpush.msra.mxu0 0.0
        %1059 = vmatpush.msra.mxu0 0.0
        %1060 = vmatpush.msra.mxu0 0.0
        %1061 = vmatpush.msra.mxu0 0.0
        %1062 = vmatpush.msra.mxu0 0.0
        %1063 = vmatpush.msra.mxu0 0.0
        %1064 = vmatpush.msra.mxu0 0.0
        %1065 = vmatpush.msra.mxu0 0.0
        %1066 = vmatpush.msra.mxu0 0.0
        %1067 = vmatpush.msra.mxu0 %v1013
        %1068 = vmatpush.msra.mxu0 %v1012
        %1069 = vmatpush.msra.mxu0 %v1011
        %1070 = vmatpush.msra.mxu0 %v1010
        %1071 = vmatmul.f32.gmra.mxu0 %v1053
        %v1072 = vpop.f32.mrf.mxu0
        %v1073 = vadd.f32 %v1043, %v1072
        %1074 = vdwg.mxu0
        %1075 = vmatpush.msra.mxu0 0.0
        %1076 = vmatpush.msra.mxu0 0.0
        %1077 = vmatpush.msra.mxu0 0.0
        %1078 = vmatpush.msra.mxu0 0.0
        %1079 = vmatpush.msra.mxu0 0.0
        %1080 = vmatpush.msra.mxu0 0.0
        %1081 = vmatpush.msra.mxu0 0.0
        %1082 = vmatpush.msra.mxu0 0.0
        %1083 = vmatpush.msra.mxu0 0.0
        %1084 = vmatpush.msra.mxu0 0.0
        %1085 = vmatpush.msra.mxu0 0.0
        %1086 = vmatpush.msra.mxu0 0.0
        %1087 = vmatpush.msra.mxu0 %v1017
        %1088 = vmatpush.msra.mxu0 %v1016
        %1089 = vmatpush.msra.mxu0 %v1015
        %1090 = vmatpush.msra.mxu0 %v1014
        %1091 = vmatmul.f32.gmra.mxu0 %v1053
        %v1092 = vpop.f32.mrf.mxu0
        %v1093 = vadd.f32 %v1044, %v1092
        %1094 = vdwg.mxu0
        %1095 = vmatpush.msra.mxu0 0.0
        %1096 = vmatpush.msra.mxu0 0.0
        %1097 = vmatpush.msra.mxu0 0.0
        %1098 = vmatpush.msra.mxu0 0.0
        %1099 = vmatpush.msra.mxu0 0.0
        %1100 = vmatpush.msra.mxu0 0.0
        %1101 = vmatpush.msra.mxu0 0.0
        %1102 = vmatpush.msra.mxu0 0.0
        %1103 = vmatpush.msra.mxu0 0.0
        %1104 = vmatpush.msra.mxu0 0.0
        %1105 = vmatpush.msra.mxu0 0.0
        %1106 = vmatpush.msra.mxu0 0.0
        %1107 = vmatpush.msra.mxu0 %v1021
        %1108 = vmatpush.msra.mxu0 %v1020
        %1109 = vmatpush.msra.mxu0 %v1019
        %1110 = vmatpush.msra.mxu0 %v1018
        %1111 = vmatmul.f32.gmra.mxu0 %v1053
        %v1112 = vpop.f32.mrf.mxu0
        %v1113 = vadd.f32 %v1045, %v1112
        %1114 = vdwg.mxu0
        %1115 = vmatpush.msra.mxu0 0.0
        %1116 = vmatpush.msra.mxu0 0.0
        %1117 = vmatpush.msra.mxu0 0.0
        %1118 = vmatpush.msra.mxu0 0.0
        %1119 = vmatpush.msra.mxu0 0.0
        %1120 = vmatpush.msra.mxu0 0.0
        %1121 = vmatpush.msra.mxu0 0.0
        %1122 = vmatpush.msra.mxu0 0.0
        %1123 = vmatpush.msra.mxu0 0.0
        %1124 = vmatpush.msra.mxu0 0.0
        %1125 = vmatpush.msra.mxu0 0.0
        %1126 = vmatpush.msra.mxu0 0.0
        %1127 = vmatpush.msra.mxu0 %v1025
        %1128 = vmatpush.msra.mxu0 %v1024
        %1129 = vmatpush.msra.mxu0 %v1023
        %1130 = vmatpush.msra.mxu0 %v1022
        %1131 = vmatmul.f32.gmra.mxu0 %v1053
        %v1132 = vpop.f32.mrf.mxu0
        %v1133 = vadd.f32 %v1046, %v1132
        %1134 = vdwg.mxu0
        %1135 = vmatpush.msra.mxu0 0.0
        %1136 = vmatpush.msra.mxu0 0.0
        %1137 = vmatpush.msra.mxu0 0.0
        %1138 = vmatpush.msra.mxu0 0.0
        %1139 = vmatpush.msra.mxu0 0.0
        %1140 = vmatpush.msra.mxu0 0.0
        %1141 = vmatpush.msra.mxu0 0.0
        %1142 = vmatpush.msra.mxu0 0.0
        %1143 = vmatpush.msra.mxu0 0.0
        %1144 = vmatpush.msra.mxu0 0.0
        %1145 = vmatpush.msra.mxu0 0.0
        %1146 = vmatpush.msra.mxu0 0.0
        %1147 = vmatpush.msra.mxu0 %v1029
        %1148 = vmatpush.msra.mxu0 %v1028
        %1149 = vmatpush.msra.mxu0 %v1027
        %1150 = vmatpush.msra.mxu0 %v1026
        %1151 = vmatmul.f32.gmra.mxu0 %v1053
        %v1152 = vpop.f32.mrf.mxu0
        %v1153 = vadd.f32 %v1047, %v1152
        %1154 = vdwg.mxu0
        %1155 = vmatpush.msra.mxu0 0.0
        %1156 = vmatpush.msra.mxu0 0.0
        %1157 = vmatpush.msra.mxu0 0.0
        %1158 = vmatpush.msra.mxu0 0.0
        %1159 = vmatpush.msra.mxu0 0.0
        %1160 = vmatpush.msra.mxu0 0.0
        %1161 = vmatpush.msra.mxu0 0.0
        %1162 = vmatpush.msra.mxu0 0.0
        %1163 = vmatpush.msra.mxu0 0.0
        %1164 = vmatpush.msra.mxu0 0.0
        %1165 = vmatpush.msra.mxu0 0.0
        %1166 = vmatpush.msra.mxu0 0.0
        %1167 = vmatpush.msra.mxu0 %v1033
        %1168 = vmatpush.msra.mxu0 %v1032
        %1169 = vmatpush.msra.mxu0 %v1031
        %1170 = vmatpush.msra.mxu0 %v1030
        %1171 = vmatmul.f32.gmra.mxu0 %v1053
        %v1172 = vpop.f32.mrf.mxu0
        %v1173 = vadd.f32 %v1048, %v1172
        %1174 = vdwg.mxu0
        %1175 = vmatpush.msra.mxu0 0.0
        %1176 = vmatpush.msra.mxu0 0.0
        %1177 = vmatpush.msra.mxu0 0.0
        %1178 = vmatpush.msra.mxu0 0.0
        %1179 = vmatpush.msra.mxu0 0.0
        %1180 = vmatpush.msra.mxu0 0.0
        %1181 = vmatpush.msra.mxu0 0.0
        %1182 = vmatpush.msra.mxu0 0.0
        %1183 = vmatpush.msra.mxu0 0.0
        %1184 = vmatpush.msra.mxu0 0.0
        %1185 = vmatpush.msra.mxu0 0.0
        %1186 = vmatpush.msra.mxu0 0.0
        %1187 = vmatpush.msra.mxu0 %v1037
        %1188 = vmatpush.msra.mxu0 %v1036
        %1189 = vmatpush.msra.mxu0 %v1035
        %1190 = vmatpush.msra.mxu0 %v1034
        %1191 = vmatmul.f32.gmra.mxu0 %v1053
        %v1192 = vpop.f32.mrf.mxu0
        %v1193 = vadd.f32 %v1049, %v1192
        %1194 = vdwg.mxu0
        %1195 = vmatpush.msra.mxu0 0.0
        %1196 = vmatpush.msra.mxu0 0.0
        %1197 = vmatpush.msra.mxu0 0.0
        %1198 = vmatpush.msra.mxu0 0.0
        %1199 = vmatpush.msra.mxu0 0.0
        %1200 = vmatpush.msra.mxu0 0.0
        %1201 = vmatpush.msra.mxu0 0.0
        %1202 = vmatpush.msra.mxu0 0.0
        %1203 = vmatpush.msra.mxu0 0.0
        %1204 = vmatpush.msra.mxu0 0.0
        %1205 = vmatpush.msra.mxu0 0.0
        %1206 = vmatpush.msra.mxu0 0.0
        %1207 = vmatpush.msra.mxu0 %v1041
        %1208 = vmatpush.msra.mxu0 %v1040
        %1209 = vmatpush.msra.mxu0 %v1039
        %1210 = vmatpush.msra.mxu0 %v1038
        %1211 = vmatmul.f32.gmra.mxu0 %v1053
        %v1212 = vpop.f32.mrf.mxu0
        %v1213 = vadd.f32 %v1050, %v1212
        %1214 = vdwg.mxu0
        %vm1215 = vcmask 1040384
        %v1216 = vsel %vm1215, %v1073, -inf
        %1217 = vmax.xlane.f32.xlu0 %v1216
        %v1218 = vpop.xlane.xlu0 %1217
        %v1219 = vsel %vm1215, %v1093, -inf
        %1220 = vmax.xlane.f32.xlu0 %v1219
        %v1221 = vpop.xlane.xlu0 %1220
        %v1222 = vsel %vm1215, %v1113, -inf
        %1223 = vmax.xlane.f32.xlu0 %v1222
        %v1224 = vpop.xlane.xlu0 %1223
        %v1225 = vsel %vm1215, %v1133, -inf
        %1226 = vmax.xlane.f32.xlu0 %v1225
        %v1227 = vpop.xlane.xlu0 %1226
        %v1228 = vsel %vm1215, %v1153, -inf
        %1229 = vmax.xlane.f32.xlu0 %v1228
        %v1230 = vpop.xlane.xlu0 %1229
        %v1231 = vsel %vm1215, %v1173, -inf
        %1232 = vmax.xlane.f32.xlu0 %v1231
        %v1233 = vpop.xlane.xlu0 %1232
        %v1234 = vsel %vm1215, %v1193, -inf
        %1235 = vmax.xlane.f32.xlu0 %v1234
        %v1236 = vpop.xlane.xlu0 %1235
        %v1237 = vsel %vm1215, %v1213, -inf
        %1238 = vmax.xlane.f32.xlu0 %v1237
        %v1239 = vpop.xlane.xlu0 %1238
        %v1240 = vsub.f32 %v1073, %v1218
        %v1241 = vsub.f32 %v1093, %v1221
        %v1242 = vsub.f32 %v1113, %v1224
        %v1243 = vsub.f32 %v1133, %v1227
        %v1244 = vsub.f32 %v1153, %v1230
        %v1245 = vsub.f32 %v1173, %v1233
        %v1246 = vsub.f32 %v1193, %v1236
        %v1247 = vsub.f32 %v1213, %v1239
        %v1248 = vmul.f32 %v1240, 1.442695
        %v1249 = vpow.pop %v1248
        %v1250 = vmul.f32 %v1241, 1.442695
        %v1251 = vpow.pop %v1250
        %v1252 = vmul.f32 %v1242, 1.442695
        %v1253 = vpow.pop %v1252
        %v1254 = vmul.f32 %v1243, 1.442695
        %v1255 = vpow.pop %v1254
        %v1256 = vmul.f32 %v1244, 1.442695
        %v1257 = vpow.pop %v1256
        %v1258 = vmul.f32 %v1245, 1.442695
        %v1259 = vpow.pop %v1258
        %v1260 = vmul.f32 %v1246, 1.442695
        %v1261 = vpow.pop %v1260
        %v1262 = vmul.f32 %v1247, 1.442695
        %v1263 = vpow.pop %v1262
        %v1264 = vsel %vm1215, %v1249, 0.0
        %1265 = vadd.xlane.f32.xlu0 %v1264
        %v1266 = vpop.xlane.xlu0 %1265
        %v1267 = vsel %vm1215, %v1251, 0.0
        %1268 = vadd.xlane.f32.xlu0 %v1267
        %v1269 = vpop.xlane.xlu0 %1268
        %v1270 = vsel %vm1215, %v1253, 0.0
        %1271 = vadd.xlane.f32.xlu0 %v1270
        %v1272 = vpop.xlane.xlu0 %1271
        %v1273 = vsel %vm1215, %v1255, 0.0
        %1274 = vadd.xlane.f32.xlu0 %v1273
        %v1275 = vpop.xlane.xlu0 %1274
        %v1276 = vsel %vm1215, %v1257, 0.0
        %1277 = vadd.xlane.f32.xlu0 %v1276
        %v1278 = vpop.xlane.xlu0 %1277
        %v1279 = vsel %vm1215, %v1259, 0.0
        %1280 = vadd.xlane.f32.xlu0 %v1279
        %v1281 = vpop.xlane.xlu0 %1280
        %v1282 = vsel %vm1215, %v1261, 0.0
        %1283 = vadd.xlane.f32.xlu0 %v1282
        %v1284 = vpop.xlane.xlu0 %1283
        %v1285 = vsel %vm1215, %v1263, 0.0
        %1286 = vadd.xlane.f32.xlu0 %v1285
        %v1287 = vpop.xlane.xlu0 %1286
        %v1288 = vrcp.pop %v1266
        %v1289 = vmul.f32 %v1266, %v1288
        %v1290 = vsub.f32 1.0, %v1289
        %v1291 = vmul.f32 %v1288, %v1290
        %v1292 = vadd.f32 %v1288, %v1291
        %vm1293 = vweird.f32 %v1266
        %vm1294 = vweird.f32 %v1288
        %vm1295 = vmor %vm1293, %vm1294
        %v1296 = vsel %vm1295, %v1288, %v1292
        %v1297 = vand.u32 2147483647, %v1266
        %vm1298 = vcmp.eq.f32.partialorder %v1297, 8.507059e+37
        %v1299 = vand.u32 %v1266, 2147483648
        %v1300 = vor.u32 1.1754944e-38, %v1299
        %v1301 = vsel %vm1298, %v1300, %v1296
        %v1302 = vmul.f32 %v1249, %v1301
        %v1303 = vrcp.pop %v1269
        %v1304 = vmul.f32 %v1269, %v1303
        %v1305 = vsub.f32 1.0, %v1304
        %v1306 = vmul.f32 %v1303, %v1305
        %v1307 = vadd.f32 %v1303, %v1306
        %vm1308 = vweird.f32 %v1269
        %vm1309 = vweird.f32 %v1303
        %vm1310 = vmor %vm1308, %vm1309
        %v1311 = vsel %vm1310, %v1303, %v1307
        %v1312 = vand.u32 2147483647, %v1269
        %vm1313 = vcmp.eq.f32.partialorder %v1312, 8.507059e+37
        %v1314 = vand.u32 %v1269, 2147483648
        %v1315 = vor.u32 1.1754944e-38, %v1314
        %v1316 = vsel %vm1313, %v1315, %v1311
        %v1317 = vmul.f32 %v1251, %v1316
        %v1318 = vrcp.pop %v1272
        %v1319 = vmul.f32 %v1272, %v1318
        %v1320 = vsub.f32 1.0, %v1319
        %v1321 = vmul.f32 %v1318, %v1320
        %v1322 = vadd.f32 %v1318, %v1321
        %vm1323 = vweird.f32 %v1272
        %vm1324 = vweird.f32 %v1318
        %vm1325 = vmor %vm1323, %vm1324
        %v1326 = vsel %vm1325, %v1318, %v1322
        %v1327 = vand.u32 2147483647, %v1272
        %vm1328 = vcmp.eq.f32.partialorder %v1327, 8.507059e+37
        %v1329 = vand.u32 %v1272, 2147483648
        %v1330 = vor.u32 1.1754944e-38, %v1329
        %v1331 = vsel %vm1328, %v1330, %v1326
        %v1332 = vmul.f32 %v1253, %v1331
        %v1333 = vrcp.pop %v1275
        %v1334 = vmul.f32 %v1275, %v1333
        %v1335 = vsub.f32 1.0, %v1334
        %v1336 = vmul.f32 %v1333, %v1335
        %v1337 = vadd.f32 %v1333, %v1336
        %vm1338 = vweird.f32 %v1275
        %vm1339 = vweird.f32 %v1333
        %vm1340 = vmor %vm1338, %vm1339
        %v1341 = vsel %vm1340, %v1333, %v1337
        %v1342 = vand.u32 2147483647, %v1275
        %vm1343 = vcmp.eq.f32.partialorder %v1342, 8.507059e+37
        %v1344 = vand.u32 %v1275, 2147483648
        %v1345 = vor.u32 1.1754944e-38, %v1344
        %v1346 = vsel %vm1343, %v1345, %v1341
        %v1347 = vmul.f32 %v1255, %v1346
        %v1348 = vrcp.pop %v1278
        %v1349 = vmul.f32 %v1278, %v1348
        %v1350 = vsub.f32 1.0, %v1349
        %v1351 = vmul.f32 %v1348, %v1350
        %v1352 = vadd.f32 %v1348, %v1351
        %vm1353 = vweird.f32 %v1278
        %vm1354 = vweird.f32 %v1348
        %vm1355 = vmor %vm1353, %vm1354
        %v1356 = vsel %vm1355, %v1348, %v1352
        %v1357 = vand.u32 2147483647, %v1278
        %vm1358 = vcmp.eq.f32.partialorder %v1357, 8.507059e+37
        %v1359 = vand.u32 %v1278, 2147483648
        %v1360 = vor.u32 1.1754944e-38, %v1359
        %v1361 = vsel %vm1358, %v1360, %v1356
        %v1362 = vmul.f32 %v1257, %v1361
        %v1363 = vrcp.pop %v1281
        %v1364 = vmul.f32 %v1281, %v1363
        %v1365 = vsub.f32 1.0, %v1364
        %v1366 = vmul.f32 %v1363, %v1365
        %v1367 = vadd.f32 %v1363, %v1366
        %vm1368 = vweird.f32 %v1281
        %vm1369 = vweird.f32 %v1363
        %vm1370 = vmor %vm1368, %vm1369
        %v1371 = vsel %vm1370, %v1363, %v1367
        %v1372 = vand.u32 2147483647, %v1281
        %vm1373 = vcmp.eq.f32.partialorder %v1372, 8.507059e+37
        %v1374 = vand.u32 %v1281, 2147483648
        %v1375 = vor.u32 1.1754944e-38, %v1374
        %v1376 = vsel %vm1373, %v1375, %v1371
        %v1377 = vmul.f32 %v1259, %v1376
        %v1378 = vrcp.pop %v1284
        %v1379 = vmul.f32 %v1284, %v1378
        %v1380 = vsub.f32 1.0, %v1379
        %v1381 = vmul.f32 %v1378, %v1380
        %v1382 = vadd.f32 %v1378, %v1381
        %vm1383 = vweird.f32 %v1284
        %vm1384 = vweird.f32 %v1378
        %vm1385 = vmor %vm1383, %vm1384
        %v1386 = vsel %vm1385, %v1378, %v1382
        %v1387 = vand.u32 2147483647, %v1284
        %vm1388 = vcmp.eq.f32.partialorder %v1387, 8.507059e+37
        %v1389 = vand.u32 %v1284, 2147483648
        %v1390 = vor.u32 1.1754944e-38, %v1389
        %v1391 = vsel %vm1388, %v1390, %v1386
        %v1392 = vmul.f32 %v1261, %v1391
        %v1393 = vrcp.pop %v1287
        %v1394 = vmul.f32 %v1287, %v1393
        %v1395 = vsub.f32 1.0, %v1394
        %v1396 = vmul.f32 %v1393, %v1395
        %v1397 = vadd.f32 %v1393, %v1396
        %vm1398 = vweird.f32 %v1287
        %vm1399 = vweird.f32 %v1393
        %vm1400 = vmor %vm1398, %vm1399
        %v1401 = vsel %vm1400, %v1393, %v1397
        %v1402 = vand.u32 2147483647, %v1287
        %vm1403 = vcmp.eq.f32.partialorder %v1402, 8.507059e+37
        %v1404 = vand.u32 %v1287, 2147483648
        %v1405 = vor.u32 1.1754944e-38, %v1404
        %v1406 = vsel %vm1403, %v1405, %v1401
        %v1407 = vmul.f32 %v1263, %v1406
        %1408 = vst [vmem:[%s380] sm:$0x1] %v1302
        %1409 = vst [vmem:[%s380 + $0x1] sm:$0x1] %v1317
        %1410 = vst [vmem:[%s380 + $0x2] sm:$0x1] %v1332
        %1411 = vst [vmem:[%s380 + $0x3] sm:$0x1] %v1347
        %1412 = vst [vmem:[%s380 + $0x4] sm:$0x1] %v1362
        %1413 = vst [vmem:[%s380 + $0x5] sm:$0x1] %v1377
        %1414 = vst [vmem:[%s380 + $0x6] sm:$0x1] %v1392
        %1415 = vst [vmem:[%s380 + $0x7] sm:$0x1] %v1407
        %v1416 = vld [vmem:[%s412] sm:$0xff]
        %v1417 = vld [vmem:[%s412 + $0x8] sm:$0xff]
        %v1418 = vld [vmem:[%s412 + $0x10] sm:$0xff]
        %v1419 = vld [vmem:[%s412 + $0x18] sm:$0xff]
        %v1420 = vld [vmem:[%s412 + $0x20] sm:$0xff]
        %v1421 = vld [vmem:[%s412 + $0x28] sm:$0xff]
        %v1422 = vld [vmem:[%s412 + $0x30] sm:$0xff]
        %v1423 = vld [vmem:[%s412 + $0x38] sm:$0xff]
        %v1424 = vld [vmem:[%s412 + $0x40] sm:$0xff]
        %v1425 = vld [vmem:[%s412 + $0x48] sm:$0xff]
        %v1426 = vld [vmem:[%s412 + $0x50] sm:$0xff]
        %v1427 = vld [vmem:[%s412 + $0x58] sm:$0xff]
        %v1428 = vld [vmem:[%s412 + $0x60] sm:$0xff]
        %v1429 = vld [vmem:[%s412 + $0x68] sm:$0xff]
        %v1430 = vld [vmem:[%s412 + $0x70] sm:$0xff]
        %v1431 = vld [vmem:[%s412 + $0x78] sm:$0xff]
        %v1432 = vld [vmem:[%s412 + $0x80] sm:$0xff]
        %v1433 = vld [vmem:[%s412 + $0x88] sm:$0xff]
        %v1434 = vld [vmem:[%s412 + $0x90] sm:$0xff]
        %v1435 = vld [vmem:[%s412 + $0x98] sm:$0xff]
        %v1436 = vld [vmem:[%s412 + $0xa0] sm:$0xff]
        %v1437 = vld [vmem:[%s412 + $0xa8] sm:$0xff]
        %v1438 = vld [vmem:[%s412 + $0xb0] sm:$0xff]
        %v1439 = vld [vmem:[%s412 + $0xb8] sm:$0xff]
        %v1440 = vld [vmem:[%s412 + $0xc0] sm:$0xff]
        %v1441 = vld [vmem:[%s412 + $0xc8] sm:$0xff]
        %v1442 = vld [vmem:[%s412 + $0xd0] sm:$0xff]
        %v1443 = vld [vmem:[%s412 + $0xd8] sm:$0xff]
        %v1444 = vld [vmem:[%s412 + $0xe0] sm:$0xff]
        %v1445 = vld [vmem:[%s412 + $0xe8] sm:$0xff]
        %v1446 = vld [vmem:[%s412 + $0xf0] sm:$0xff]
        %v1447 = vld [vmem:[%s412 + $0xf8] sm:$0xff]
        %v1448 = vld [vmem:[%s412 + $0x100] sm:$0xff]
        %v1449 = vld [vmem:[%s412 + $0x108] sm:$0xff]
        %v1450 = vld [vmem:[%s412 + $0x110] sm:$0xff]
        %v1451 = vld [vmem:[%s412 + $0x118] sm:$0xff]
        %v1452 = vld [vmem:[%s412 + $0x120] sm:$0xff]
        %v1453 = vld [vmem:[%s412 + $0x128] sm:$0xff]
        %v1454 = vld [vmem:[%s412 + $0x130] sm:$0xff]
        %v1455 = vld [vmem:[%s412 + $0x138] sm:$0xff]
        %v1456 = vld [vmem:[%s412 + $0x140] sm:$0xff]
        %v1457 = vld [vmem:[%s412 + $0x148] sm:$0xff]
        %v1458 = vld [vmem:[%s412 + $0x150] sm:$0xff]
        %v1459 = vld [vmem:[%s412 + $0x158] sm:$0xff]
        %v1460 = vld [vmem:[%s412 + $0x160] sm:$0xff]
        %v1461 = vld [vmem:[%s412 + $0x168] sm:$0xff]
        %v1462 = vld [vmem:[%s412 + $0x170] sm:$0xff]
        %v1463 = vld [vmem:[%s412 + $0x178] sm:$0xff]
        %v1464 = vld [vmem:[%s412 + $0x180] sm:$0xff]
        %v1465 = vld [vmem:[%s412 + $0x188] sm:$0xff]
        %v1466 = vld [vmem:[%s412 + $0x190] sm:$0xff]
        %v1467 = vld [vmem:[%s412 + $0x198] sm:$0xff]
        %v1468 = vld [vmem:[%s412 + $0x1a0] sm:$0xff]
        %v1469 = vld [vmem:[%s412 + $0x1a8] sm:$0xff]
        %v1470 = vld [vmem:[%s412 + $0x1b0] sm:$0xff]
        %v1471 = vld [vmem:[%s412 + $0x1b8] sm:$0xff]
        %v1472 = vld [vmem:[%s412 + $0x1c0] sm:$0xff]
        %v1473 = vld [vmem:[%s412 + $0x1c8] sm:$0xff]
        %v1474 = vld [vmem:[%s412 + $0x1d0] sm:$0xff]
        %v1475 = vld [vmem:[%s412 + $0x1d8] sm:$0xff]
        %v1476 = vld [vmem:[%s412 + $0x1e0] sm:$0xff]
        %v1477 = vld [vmem:[%s412 + $0x1e8] sm:$0xff]
        %v1478 = vld [vmem:[%s412 + $0x1f0] sm:$0xff]
        %v1479 = vld [vmem:[%s412 + $0x1f8] sm:$0xff]
        %v1480 = vld [vmem:[%s412 + $0x200] sm:$0xff]
        %v1481 = vld [vmem:[%s412 + $0x208] sm:$0xff]
        %v1482 = vld [vmem:[%s412 + $0x210] sm:$0xff]
        %v1483 = vld [vmem:[%s412 + $0x218] sm:$0xff]
        %v1484 = vld [vmem:[%s412 + $0x220] sm:$0xff]
        %v1485 = vld [vmem:[%s412 + $0x228] sm:$0xff]
        %v1486 = vld [vmem:[%s412 + $0x230] sm:$0xff]
        %v1487 = vld [vmem:[%s412 + $0x238] sm:$0xff]
        %v1488 = vld [vmem:[%s412 + $0x240] sm:$0xff]
        %v1489 = vld [vmem:[%s412 + $0x248] sm:$0xff]
        %v1490 = vld [vmem:[%s412 + $0x250] sm:$0xff]
        %v1491 = vld [vmem:[%s412 + $0x258] sm:$0xff]
        %v1492 = vld [vmem:[%s412 + $0x260] sm:$0xff]
        %v1493 = vld [vmem:[%s412 + $0x268] sm:$0xff]
        %v1494 = vld [vmem:[%s412 + $0x270] sm:$0xff]
        %v1495 = vld [vmem:[%s412 + $0x278] sm:$0xff]
        %v1496 = vld [vmem:[%s412 + $0x280] sm:$0xff]
        %v1497 = vld [vmem:[%s412 + $0x288] sm:$0xff]
        %v1498 = vld [vmem:[%s412 + $0x290] sm:$0xff]
        %v1499 = vld [vmem:[%s412 + $0x298] sm:$0xff]
        %v1500 = vld [vmem:[%s412 + $0x2a0] sm:$0xff]
        %v1501 = vld [vmem:[%s412 + $0x2a8] sm:$0xff]
        %v1502 = vld [vmem:[%s412 + $0x2b0] sm:$0xff]
        %v1503 = vld [vmem:[%s412 + $0x2b8] sm:$0xff]
        %v1504 = vld [vmem:[%s412 + $0x2c0] sm:$0xff]
        %v1505 = vld [vmem:[%s412 + $0x2c8] sm:$0xff]
        %v1506 = vld [vmem:[%s412 + $0x2d0] sm:$0xff]
        %v1507 = vld [vmem:[%s412 + $0x2d8] sm:$0xff]
        %v1508 = vld [vmem:[%s412 + $0x2e0] sm:$0xff]
        %v1509 = vld [vmem:[%s412 + $0x2e8] sm:$0xff]
        %v1510 = vld [vmem:[%s412 + $0x2f0] sm:$0xff]
        %v1511 = vld [vmem:[%s412 + $0x2f8] sm:$0xff]
        %v1512 = vld [vmem:[%s412 + $0x300] sm:$0xff]
        %v1513 = vld [vmem:[%s412 + $0x308] sm:$0xff]
        %v1514 = vld [vmem:[%s412 + $0x310] sm:$0xff]
        %v1515 = vld [vmem:[%s412 + $0x318] sm:$0xff]
        %v1516 = vld [vmem:[%s412 + $0x320] sm:$0xff]
        %v1517 = vld [vmem:[%s412 + $0x328] sm:$0xff]
        %v1518 = vld [vmem:[%s412 + $0x330] sm:$0xff]
        %v1519 = vld [vmem:[%s412 + $0x338] sm:$0xff]
        %v1520 = vld [vmem:[%s412 + $0x340] sm:$0xff]
        %v1521 = vld [vmem:[%s412 + $0x348] sm:$0xff]
        %v1522 = vld [vmem:[%s412 + $0x350] sm:$0xff]
        %v1523 = vld [vmem:[%s412 + $0x358] sm:$0xff]
        %v1524 = vld [vmem:[%s412 + $0x360] sm:$0xff]
        %v1525 = vld [vmem:[%s412 + $0x368] sm:$0xff]
        %v1526 = vld [vmem:[%s412 + $0x370] sm:$0xff]
        %v1527 = vld [vmem:[%s412 + $0x378] sm:$0xff]
        %v1528 = vld [vmem:[%s412 + $0x380] sm:$0xff]
        %v1529 = vld [vmem:[%s412 + $0x388] sm:$0xff]
        %v1530 = vld [vmem:[%s412 + $0x390] sm:$0xff]
        %v1531 = vld [vmem:[%s412 + $0x398] sm:$0xff]
        %v1532 = vld [vmem:[%s412 + $0x3a0] sm:$0xff]
        %v1533 = vld [vmem:[%s412 + $0x3a8] sm:$0xff]
        %v1534 = vld [vmem:[%s412 + $0x3b0] sm:$0xff]
        %v1535 = vld [vmem:[%s412 + $0x3b8] sm:$0xff]
        %v1536 = vld [vmem:[%s412 + $0x3c0] sm:$0xff]
        %v1537 = vld [vmem:[%s412 + $0x3c8] sm:$0xff]
        %v1538 = vld [vmem:[%s412 + $0x3d0] sm:$0xff]
        %v1539 = vld [vmem:[%s412 + $0x3d8] sm:$0xff]
        %v1540 = vld [vmem:[%s412 + $0x3e0] sm:$0xff]
        %v1541 = vld [vmem:[%s412 + $0x3e8] sm:$0xff]
        %v1542 = vld [vmem:[%s412 + $0x3f0] sm:$0xff]
        %v1543 = vld [vmem:[%s412 + $0x3f8] sm:$0xff]
        %1544 = vmatpush.msra.mxu0 %v1431
        %1545 = vmatpush.msra.mxu0 %v1430
        %1546 = vmatpush.msra.mxu0 %v1429
        %1547 = vmatpush.msra.mxu0 %v1428
        %1548 = vmatpush.msra.mxu0 %v1427
        %1549 = vmatpush.msra.mxu0 %v1426
        %1550 = vmatpush.msra.mxu0 %v1425
        %1551 = vmatpush.msra.mxu0 %v1424
        %1552 = vmatpush.msra.mxu0 %v1423
        %1553 = vmatpush.msra.mxu0 %v1422
        %1554 = vmatpush.msra.mxu0 %v1421
        %1555 = vmatpush.msra.mxu0 %v1420
        %1556 = vmatpush.msra.mxu0 %v1419
        %1557 = vmatpush.msra.mxu0 %v1418
        %1558 = vmatpush.msra.mxu0 %v1417
        %1559 = vmatpush.msra.mxu0 %v1416
        %1560 = vmatmul.f32.gmra.mxu0 %v1302
        %v1561 = vpop.f32.mrf.mxu0
        %v1562 = vadd.f32 0.0, %v1561
        %1563 = vdwg.mxu0
        %1564 = vmatpush.msra.mxu0 %v1447
        %1565 = vmatpush.msra.mxu0 %v1446
        %1566 = vmatpush.msra.mxu0 %v1445
        %1567 = vmatpush.msra.mxu0 %v1444
        %1568 = vmatpush.msra.mxu0 %v1443
        %1569 = vmatpush.msra.mxu0 %v1442
        %1570 = vmatpush.msra.mxu0 %v1441
        %1571 = vmatpush.msra.mxu0 %v1440
        %1572 = vmatpush.msra.mxu0 %v1439
        %1573 = vmatpush.msra.mxu0 %v1438
        %1574 = vmatpush.msra.mxu0 %v1437
        %1575 = vmatpush.msra.mxu0 %v1436
        %1576 = vmatpush.msra.mxu0 %v1435
        %1577 = vmatpush.msra.mxu0 %v1434
        %1578 = vmatpush.msra.mxu0 %v1433
        %1579 = vmatpush.msra.mxu0 %v1432
        %1580 = vmatmul.f32.gmra.mxu0 %v1317
        %v1581 = vpop.f32.mrf.mxu0
        %v1582 = vadd.f32 0.0, %v1581
        %1583 = vdwg.mxu0
        %1584 = vmatpush.msra.mxu0 %v1463
        %1585 = vmatpush.msra.mxu0 %v1462
        %1586 = vmatpush.msra.mxu0 %v1461
        %1587 = vmatpush.msra.mxu0 %v1460
        %1588 = vmatpush.msra.mxu0 %v1459
        %1589 = vmatpush.msra.mxu0 %v1458
        %1590 = vmatpush.msra.mxu0 %v1457
        %1591 = vmatpush.msra.mxu0 %v1456
        %1592 = vmatpush.msra.mxu0 %v1455
        %1593 = vmatpush.msra.mxu0 %v1454
        %1594 = vmatpush.msra.mxu0 %v1453
        %1595 = vmatpush.msra.mxu0 %v1452
        %1596 = vmatpush.msra.mxu0 %v1451
        %1597 = vmatpush.msra.mxu0 %v1450
        %1598 = vmatpush.msra.mxu0 %v1449
        %1599 = vmatpush.msra.mxu0 %v1448
        %1600 = vmatmul.f32.gmra.mxu0 %v1332
        %v1601 = vpop.f32.mrf.mxu0
        %v1602 = vadd.f32 0.0, %v1601
        %1603 = vdwg.mxu0
        %1604 = vmatpush.msra.mxu0 %v1479
        %1605 = vmatpush.msra.mxu0 %v1478
        %1606 = vmatpush.msra.mxu0 %v1477
        %1607 = vmatpush.msra.mxu0 %v1476
        %1608 = vmatpush.msra.mxu0 %v1475
        %1609 = vmatpush.msra.mxu0 %v1474
        %1610 = vmatpush.msra.mxu0 %v1473
        %1611 = vmatpush.msra.mxu0 %v1472
        %1612 = vmatpush.msra.mxu0 %v1471
        %1613 = vmatpush.msra.mxu0 %v1470
        %1614 = vmatpush.msra.mxu0 %v1469
        %1615 = vmatpush.msra.mxu0 %v1468
        %1616 = vmatpush.msra.mxu0 %v1467
        %1617 = vmatpush.msra.mxu0 %v1466
        %1618 = vmatpush.msra.mxu0 %v1465
        %1619 = vmatpush.msra.mxu0 %v1464
        %1620 = vmatmul.f32.gmra.mxu0 %v1347
        %v1621 = vpop.f32.mrf.mxu0
        %v1622 = vadd.f32 0.0, %v1621
        %1623 = vdwg.mxu0
        %1624 = vmatpush.msra.mxu0 %v1495
        %1625 = vmatpush.msra.mxu0 %v1494
        %1626 = vmatpush.msra.mxu0 %v1493
        %1627 = vmatpush.msra.mxu0 %v1492
        %1628 = vmatpush.msra.mxu0 %v1491
        %1629 = vmatpush.msra.mxu0 %v1490
        %1630 = vmatpush.msra.mxu0 %v1489
        %1631 = vmatpush.msra.mxu0 %v1488
        %1632 = vmatpush.msra.mxu0 %v1487
        %1633 = vmatpush.msra.mxu0 %v1486
        %1634 = vmatpush.msra.mxu0 %v1485
        %1635 = vmatpush.msra.mxu0 %v1484
        %1636 = vmatpush.msra.mxu0 %v1483
        %1637 = vmatpush.msra.mxu0 %v1482
        %1638 = vmatpush.msra.mxu0 %v1481
        %1639 = vmatpush.msra.mxu0 %v1480
        %1640 = vmatmul.f32.gmra.mxu0 %v1362
        %v1641 = vpop.f32.mrf.mxu0
        %v1642 = vadd.f32 0.0, %v1641
        %1643 = vdwg.mxu0
        %1644 = vmatpush.msra.mxu0 %v1511
        %1645 = vmatpush.msra.mxu0 %v1510
        %1646 = vmatpush.msra.mxu0 %v1509
        %1647 = vmatpush.msra.mxu0 %v1508
        %1648 = vmatpush.msra.mxu0 %v1507
        %1649 = vmatpush.msra.mxu0 %v1506
        %1650 = vmatpush.msra.mxu0 %v1505
        %1651 = vmatpush.msra.mxu0 %v1504
        %1652 = vmatpush.msra.mxu0 %v1503
        %1653 = vmatpush.msra.mxu0 %v1502
        %1654 = vmatpush.msra.mxu0 %v1501
        %1655 = vmatpush.msra.mxu0 %v1500
        %1656 = vmatpush.msra.mxu0 %v1499
        %1657 = vmatpush.msra.mxu0 %v1498
        %1658 = vmatpush.msra.mxu0 %v1497
        %1659 = vmatpush.msra.mxu0 %v1496
        %1660 = vmatmul.f32.gmra.mxu0 %v1377
        %v1661 = vpop.f32.mrf.mxu0
        %v1662 = vadd.f32 0.0, %v1661
        %1663 = vdwg.mxu0
        %1664 = vmatpush.msra.mxu0 %v1527
        %1665 = vmatpush.msra.mxu0 %v1526
        %1666 = vmatpush.msra.mxu0 %v1525
        %1667 = vmatpush.msra.mxu0 %v1524
        %1668 = vmatpush.msra.mxu0 %v1523
        %1669 = vmatpush.msra.mxu0 %v1522
        %1670 = vmatpush.msra.mxu0 %v1521
        %1671 = vmatpush.msra.mxu0 %v1520
        %1672 = vmatpush.msra.mxu0 %v1519
        %1673 = vmatpush.msra.mxu0 %v1518
        %1674 = vmatpush.msra.mxu0 %v1517
        %1675 = vmatpush.msra.mxu0 %v1516
        %1676 = vmatpush.msra.mxu0 %v1515
        %1677 = vmatpush.msra.mxu0 %v1514
        %1678 = vmatpush.msra.mxu0 %v1513
        %1679 = vmatpush.msra.mxu0 %v1512
        %1680 = vmatmul.f32.gmra.mxu0 %v1392
        %v1681 = vpop.f32.mrf.mxu0
        %v1682 = vadd.f32 0.0, %v1681
        %1683 = vdwg.mxu0
        %1684 = vmatpush.msra.mxu0 %v1543
        %1685 = vmatpush.msra.mxu0 %v1542
        %1686 = vmatpush.msra.mxu0 %v1541
        %1687 = vmatpush.msra.mxu0 %v1540
        %1688 = vmatpush.msra.mxu0 %v1539
        %1689 = vmatpush.msra.mxu0 %v1538
        %1690 = vmatpush.msra.mxu0 %v1537
        %1691 = vmatpush.msra.mxu0 %v1536
        %1692 = vmatpush.msra.mxu0 %v1535
        %1693 = vmatpush.msra.mxu0 %v1534
        %1694 = vmatpush.msra.mxu0 %v1533
        %1695 = vmatpush.msra.mxu0 %v1532
        %1696 = vmatpush.msra.mxu0 %v1531
        %1697 = vmatpush.msra.mxu0 %v1530
        %1698 = vmatpush.msra.mxu0 %v1529
        %1699 = vmatpush.msra.mxu0 %v1528
        %1700 = vmatmul.f32.gmra.mxu0 %v1407
        %v1701 = vpop.f32.mrf.mxu0
        %v1702 = vadd.f32 0.0, %v1701
        %1703 = vdwg.mxu0
        %vm1704 = vcmask 253952
        %1705 = vst.msk [vmem:[%s373] sm:$0x1] %vm1704, %v1562
        %1706 = vst.msk [vmem:[%s373 + $0x1] sm:$0x1] %vm1704, %v1582
        %1707 = vst.msk [vmem:[%s373 + $0x2] sm:$0x1] %vm1704, %v1602
        %1708 = vst.msk [vmem:[%s373 + $0x3] sm:$0x1] %vm1704, %v1622
        %1709 = vst.msk [vmem:[%s373 + $0x4] sm:$0x1] %vm1704, %v1642
        %1710 = vst.msk [vmem:[%s373 + $0x5] sm:$0x1] %vm1704, %v1662
        %1711 = vst.msk [vmem:[%s373 + $0x6] sm:$0x1] %vm1704, %v1682
        %1712 = vst.msk [vmem:[%s373 + $0x7] sm:$0x1] %vm1704, %v1702
        %s1713 = sand.u32 %s206, 1
        %s1714 = scalar_lea.sflag [#allocation3], %s1713
        %s1715 = sand.u32 %s206, 1
        %s1716 = smul.addr %s1715, 8
        %s1717 = scalar_lea.vmem [#allocation2], %s1716
        %s1718 = sand.u32 %s232, 1
        %s1719 = scalar_lea.sflag [#allocation5], %s1718
        %s1720 = sand.u32 %s232, 1
        %s1721 = smul.addr %s1720, 8
        %s1722 = scalar_lea.vmem [#allocation4], %s1721
        // Predicated region
        $region49: #{location_aware_attention.1} parent=47 // pred_check
          %p1723 = pneg %p216
        $region50: #{location_aware_attention.1} parent=47 // pred_check_branch
          %1725 = sbr.rel (%p1723) target = $region52
        $region51: #{location_aware_attention.1} parent=47 // pred_region
          %s1726 = smul.u32 8, %s26
          %1728 = vsyncadd %s1714, 0
          %s1729 = scalar_lea.hbm %s7, %s1726
          %s1730 = sshll.u32 %s1717, 4
          %s1731 = int_to_ptr.vmem [resolvable:$true] %s1730
          %s1732 = sshll.u32 %s1729, 4
          %s1733 = int_to_ptr.hbm [resolvable:$true] %s1732
          %1738 = dma.vmem_to_hbm [thread:$0]  %s1731, 128, %s1733, %s1714, 16, 16, 1
        $region52: #{location_aware_attention.1} parent=47 // pred_fallthru
          _
        // Predicated region
        $region53: #{location_aware_attention.1} parent=47 // pred_check
          %p1739 = pneg %p242
        $region54: #{location_aware_attention.1} parent=47 // pred_check_branch
          %1741 = sbr.rel (%p1739) target = $region56
        $region55: #{location_aware_attention.1} parent=47 // pred_region
          %s1742 = smul.u32 8, %s26
          %1744 = vsyncadd %s1719, 0
          %s1745 = scalar_lea.hbm %s8, %s1742
          %s1746 = sshll.u32 %s1722, 4
          %s1747 = int_to_ptr.vmem [resolvable:$true] %s1746
          %s1748 = sshll.u32 %s1745, 4
          %s1749 = int_to_ptr.hbm [resolvable:$true] %s1748
          %1754 = dma.vmem_to_hbm [thread:$0]  %s1747, 128, %s1749, %s1719, 16, 16, 1
        $region56: #{location_aware_attention.1} parent=47 // pred_fallthru
          _
      $region48: #{location_aware_attention.1} parent=5 // pred_fallthru
        _
      %p1755 = scmp.le.s32.totalorder 2, %s21
      // Predicated region
      $region57: #{location_aware_attention.1} parent=5 // pred_check
        %p1756 = pneg %p1755
      $region58: #{location_aware_attention.1} parent=5 // pred_check_branch
        %1758 = sbr.rel (%p1756) target = $region60
      $region59: #{location_aware_attention.1} parent=5 // pred_region
        %s1759 = ssub.s32 %s21, 2
        // Predicated region
        $region61: #{location_aware_attention.1} parent=59 // pred_check
          %p1760 = pneg %p222
        $region62: #{location_aware_attention.1} parent=59 // pred_check_branch
          %1762 = sbr.rel (%p1760) target = $region64
        $region63: #{location_aware_attention.1} parent=59 // pred_region
          %s1763 = sand.u32 %s207, 1
          %s1764 = scalar_lea.sflag [#allocation3], %s1763
          %s1765 = sand.u32 %s207, 1
          %s1766 = smul.addr %s1765, 8
          %s1767 = scalar_lea.vmem [#allocation2], %s1766
          %1769 = dma.done %s1764, 128
        $region64: #{location_aware_attention.1} parent=59 // pred_fallthru
          _
        // Predicated region
        $region65: #{location_aware_attention.1} parent=59 // pred_check
          %p1770 = pneg %p248
        $region66: #{location_aware_attention.1} parent=59 // pred_check_branch
          %1772 = sbr.rel (%p1770) target = $region68
        $region67: #{location_aware_attention.1} parent=59 // pred_region
          %s1773 = sand.u32 %s233, 1
          %s1774 = scalar_lea.sflag [#allocation5], %s1773
          %s1775 = sand.u32 %s233, 1
          %s1776 = smul.addr %s1775, 8
          %s1777 = scalar_lea.vmem [#allocation4], %s1776
          %1779 = dma.done %s1774, 128
        $region68: #{location_aware_attention.1} parent=59 // pred_fallthru
          _
      $region60: #{location_aware_attention.1} parent=5 // pred_fallthru
        _
    $region6: #{location_aware_attention.1} parent=1 // loop_footer
      %s25 = sadd.s32 1, %s21
    $region7: #{location_aware_attention.1} parent=1 // loop_footer_branch
      %20 = sbr.rel target = $region3
    $region8: #{location_aware_attention.1} parent=1 // loop_exit
      _
    %1780 = vsyncpa [#allocation3], 1
    %s1781 = scalar_lea.sflag [#allocation3], 1
    %1782 = vsyncpa %s1781, 1
    %1783 = vsyncpa [#allocation5], 1
    %s1784 = scalar_lea.sflag [#allocation5], 1
    %1785 = vsyncpa %s1784, 1

</llo_original>
